<compile_context>
chip_gen: v6e
topology: v6e:2x2x1
jax: 0.10.0
libtpu: 0.0.40
codegen_flags: <defaults>
</compile_context>

<pallas_src>
import numpy as np
import jax
import jax.numpy as jnp
from jax.experimental import pallas as pl
from jax.experimental.pallas import tpu as pltpu

# ---------------- configuration (consistent with the torch module) ----------------
NUM_FEATURES = 10          # num_features_df
VALUE_EMB    = 7           # value_embedding
NRK          = 20          # nr_kernels
K            = 3           # kernel_size
SEQ_LEN      = 12
HIDDEN       = 40          # hidden_size (divisible by 10)
H10          = HIDDEN // 10
C_OUT        = 1           # c
B            = 2           # batch
P_FIX        = 0.2
WREG         = 1e-5
CIN          = VALUE_EMB + 1

L1  = SEQ_LEN - K + 1      # 10  conv1 output length
LP1 = L1 - 2               # 8   after MaxPool1d(3, 1)
L2  = LP1 - K + 1          # 6   conv3b output length
LP2 = L2 - 2               # 4   after MaxPool1d(3, 1)
LEN_LIN3 = NRK * LP2       # 80  == nr_kernels*(seq_len - 2*(K-1) - 2*2)

SEG    = 16                # per-batch segment rows (8-aligned segment starts)
NROWS  = B * SEG           # 32 activation rows, row (b, i) = b*SEG + i
ROWS8  = 8                 # dense-stage row tile; batch b lives at row b*Q
Q      = ROWS8 // B        # 4
NUM_SAMPLES = 8            # Monte-Carlo dropout samples = Pallas grid extent
PCOLS  = 128
MCOLS  = 128

assert SEQ_LEN <= SEG and LP2 <= Q and ROWS8 % B == 0 and LEN_LIN3 == LP2 * NRK


# ---------------- packed parameter tile layout (all bands lane-0, 8-aligned rows) ----------------
def _build_param_layout():
    layout, cur = {}, 0

    def alloc(name, nrows):
        nonlocal cur
        layout[name] = cur
        cur = (cur + nrows + 7) & ~7      # next band starts on an 8-row boundary

    for k in range(K):
        alloc(f"w1_{k}", CIN)             # (CIN, NRK)   conv1 tap k
    alloc("b1", 1)
    for k in range(K):
        alloc(f"w2_{k}", NRK)             # (NRK, NRK)   conv3b tap k
    alloc("b2", 1)
    for l in range(LP2):
        alloc(f"w4_{l}", NRK)             # (NRK, HIDDEN) lin4 block for position l
    alloc("b4", 1)
    alloc("w5", HIDDEN)                   # (HIDDEN, H10)
    alloc("b5", 1)
    alloc("w6", H10)                      # (H10, 128)  lanes >= C_OUT are zero
    alloc("b6", 1)                        # (1, 128)
    for l in range(LP2):
        alloc(f"sel_{l}", ROWS8)          # (ROWS8, NROWS) row-compaction matrices
    alloc("D1", NROWS)                    # (NROWS, NROWS) block-diag shift-by-1
    alloc("D2", NROWS)                    # (NROWS, NROWS) block-diag shift-by-2
    return layout, cur


P_LAYOUT, PROWS = _build_param_layout()

# ---------------- per-sample dropout mask tile layout (row bands, lane 0) ----------------
R_M1 = 0                    # rows 0:32,  cols 0:CIN    conv1 per-(batch,channel) mask, row-broadcast
R_M3 = 32                   # rows 32:64, cols 0:NRK    conv3b per-(batch,channel) mask, row-broadcast
R_M4 = 64                   # rows 64:96, cols 0:NRK    lin4 elementwise mask at row b*SEG+l
R_M5 = 96                   # rows 96:104,cols 0:HIDDEN lin5 mask (batch b at row b*Q)
R_M6 = 104                  # rows 104:112,cols 0:H10   lin6_mu mask (batch b at row b*Q)
MROWS = 112


def _stoch_cnn_kernel(x_ref, m_ref, p_ref, o_ref):
    x = x_ref[...]                       # (NROWS, CIN) rows = (batch, position), lanes = channel
    M = m_ref[0]                         # (MROWS, MCOLS) this sample's dropout masks
    P = p_ref[...]                       # (PROWS, PCOLS) packed params (grid-resident)

    def dot(a, b):
        return jnp.dot(a, b, preferred_element_type=jnp.float32)

    def band(name, nrows, ncols):
        r = P_LAYOUT[name]
        return P[r:r + nrows, 0:ncols]

    w1 = [band(f"w1_{k}", CIN, NRK) for k in range(K)]
    b1 = band("b1", 1, NRK)
    w2 = [band(f"w2_{k}", NRK, NRK) for k in range(K)]
    b2 = band("b2", 1, NRK)
    w4 = [band(f"w4_{l}", NRK, HIDDEN) for l in range(LP2)]
    b4 = band("b4", 1, HIDDEN)
    w5 = band("w5", HIDDEN, H10)
    b5 = band("b5", 1, H10)
    w6 = band("w6", H10, PCOLS)
    b6 = band("b6", 1, PCOLS)
    sel = [band(f"sel_{l}", ROWS8, NROWS) for l in range(LP2)]
    D1 = band("D1", NROWS, NROWS)
    D2 = band("D2", NROWS, NROWS)

    m1 = M[R_M1:R_M1 + NROWS, 0:CIN]
    m3 = M[R_M3:R_M3 + NROWS, 0:NRK]
    m4 = M[R_M4:R_M4 + NROWS, 0:NRK]
    m5 = M[R_M5:R_M5 + ROWS8, 0:HIDDEN]
    m6 = M[R_M6:R_M6 + ROWS8, 0:H10]

    # ---- conv block 1: channel dropout -> conv taps via shift-matmuls -> ReLU -> MaxPool(3,1) ----
    xd = x * m1
    h1 = jnp.maximum(
        b1 + dot(xd, w1[0]) + dot(dot(D1, xd), w1[1]) + dot(dot(D2, xd), w1[2]), 0.0)
    p1 = jnp.maximum(jnp.maximum(h1, dot(D1, h1)), dot(D2, h1))      # pool window via shifts

    # ---- conv block 2 ----
    pd = p1 * m3
    h2 = jnp.maximum(
        b2 + dot(pd, w2[0]) + dot(dot(D1, pd), w2[1]) + dot(dot(D2, pd), w2[2]), 0.0)
    p2 = jnp.maximum(jnp.maximum(h2, dot(D1, h2)), dot(D2, h2))

    # ---- flatten (channel-major) + linear4: elementwise dropout, then per-position
    #      selection-matrix dots on the idle MXU (no row gathers / concats / reshapes) ----
    p2m = p2 * m4
    acc4 = b4
    for l in range(LP2):
        acc4 = acc4 + dot(dot(sel[l], p2m), w4[l])                   # (ROWS8, HIDDEN)
    x4 = jnp.maximum(acc4, 0.0)

    # ---- dense head ----
    x5 = jnp.maximum(dot(x4 * m5, w5) + b5, 0.0)                     # (ROWS8, H10)
    o_ref[0] = dot(x5 * m6, w6) + b6                                 # (ROWS8, 128) lane-dense
    # TODO(synk): the torch forward also evaluates a heteroscedastic log_var head but discards
    # it (returns only (mean, regularization.sum())); its params still count toward reg (wrapper).


def pack_params(params):
    """One-time relayout of all kernel-side weights/biases + constant shift/selection
    matrices into a single (PROWS, PCOLS) f32 tile.  Call ONCE per parameter set."""
    P = np.zeros((PROWS, PCOLS), np.float32)

    def put(name, arr):
        a = np.asarray(arr, np.float32)
        r = P_LAYOUT[name]
        P[r:r + a.shape[0], 0:a.shape[1]] = a

    conv1_w = np.asarray(params["conv1_w"])          # (NRK, CIN, K)
    conv2_w = np.asarray(params["conv3b_w"])         # (NRK, NRK, K)
    for k in range(K):
        put(f"w1_{k}", conv1_w[:, :, k].T)           # (CIN, NRK)
        put(f"w2_{k}", conv2_w[:, :, k].T)           # (NRK, NRK)
    put("b1", np.asarray(params["conv1_b"])[None, :])
    put("b2", np.asarray(params["conv3b_b"])[None, :])

    w4 = np.asarray(params["lin4_w"]).reshape(HIDDEN, NRK, LP2)      # [j, c, l]
    for l in range(LP2):
        put(f"w4_{l}", w4[:, :, l].T)                # (NRK, HIDDEN): [c, j]
    put("b4", np.asarray(params["lin4_b"])[None, :])
    put("w5", np.asarray(params["lin5_w"]).T)        # (HIDDEN, H10)
    put("b5", np.asarray(params["lin5_b"])[None, :])
    put("w6", np.asarray(params["lin6mu_w"]).T)      # (H10, C_OUT) -> lanes >= C_OUT stay zero
    put("b6", np.asarray(params["lin6mu_b"])[None, :])

    # row-compaction matrices: sel_l[b*Q, b*SEG + l] = 1
    for l in range(LP2):
        S = np.zeros((ROWS8, NROWS), np.float32)
        for b in range(B):
            S[b * Q, b * SEG + l] = 1.0
        put(f"sel_{l}", S)

    # block-diagonal shift matrices (shift within a batch segment only)
    for shift, name in ((1, "D1"), (2, "D2")):
        D = np.zeros((NROWS, NROWS), np.float32)
        for r in range(NROWS):
            c = r + shift
            if c < NROWS and (r // SEG) == (c // SEG):
                D[r, c] = 1.0
        put(name, D)
    return jnp.asarray(P)


def _sum_of_square_reg(params):
    ssq = lambda a: jnp.sum(jnp.square(a))
    # TODO(synk): regularization[1] is never written by torch when nr_conv_layers == 2
    # (uninitialized torch.empty is summed); treated as exactly 0 here.
    return (WREG / (1.0 - P_FIX)) * (
        ssq(params["conv1_w"]) + ssq(params["conv1_b"])
        + ssq(params["conv3b_w"]) + ssq(params["conv3b_b"])
        + ssq(params["lin4_w"]) + ssq(params["lin4_b"])
        + ssq(params["lin5_w"]) + ssq(params["lin5_b"])
        + ssq(params["lin6mu_w"]) + ssq(params["lin6mu_b"])
        + ssq(params["lin6lv_w"]) + ssq(params["lin6lv_b"]))


@jax.jit
def stochastic_cnn_forward(x_cat, x_range, params, packed, key):
    """Returns (means (S,B,C_OUT), regularization, mask_tiles (S,MROWS,MCOLS))."""
    # glue: embedding + concat; pad each batch segment to SEG rows so every per-batch
    # segment starts on an 8-aligned sublane boundary inside the kernel tile.
    emb = jnp.take(params["embedding"], x_cat, axis=0)               # (B, L, E)
    x = jnp.concatenate([emb, x_range[..., None]], axis=-1).astype(jnp.float32)
    x2d = jnp.pad(x, ((0, 0), (0, SEG - SEQ_LEN), (0, 0))).reshape(NROWS, CIN)

    # dropout keep-masks for all MC samples (plain XLA; pltpu PRNG has no interpret lowering)
    inv_retain = 1.0 / (1.0 - P_FIX)
    ks = jax.random.split(key, 5)

    def keep(k, shape):
        return jnp.where(jax.random.uniform(k, shape) >= P_FIX,
                         jnp.float32(inv_retain), jnp.float32(0.0))

    S = NUM_SAMPLES
    m1 = keep(ks[0], (S, B, CIN))                    # per-(batch, channel), broadcast over L
    m3 = keep(ks[1], (S, B, NRK))
    m4 = keep(ks[2], (S, NROWS, NRK))                # elementwise over flattened features
    m5 = keep(ks[3], (S, ROWS8, HIDDEN))
    m6 = keep(ks[4], (S, ROWS8, H10))
    m1r = jnp.broadcast_to(m1[:, :, None, :], (S, B, SEG, CIN)).reshape(S, NROWS, CIN)
    m3r = jnp.broadcast_to(m3[:, :, None, :], (S, B, SEG, NRK)).reshape(S, NROWS, NRK)

    masks = jnp.zeros((S, MROWS, MCOLS), jnp.float32)
    masks = masks.at[:, R_M1:R_M1 + NROWS, 0:CIN].set(m1r)
    masks = masks.at[:, R_M3:R_M3 + NROWS, 0:NRK].set(m3r)
    masks = masks.at[:, R_M4:R_M4 + NROWS, 0:NRK].set(m4)
    masks = masks.at[:, R_M5:R_M5 + ROWS8, 0:HIDDEN].set(m5)
    masks = masks.at[:, R_M6:R_M6 + ROWS8, 0:H10].set(m6)

    out_tiles = pl.pallas_call(
        _stoch_cnn_kernel,
        out_shape=jax.ShapeDtypeStruct((S, ROWS8, 128), jnp.float32),
        grid=(S,),
        in_specs=[
            pl.BlockSpec((NROWS, CIN), lambda s: (0, 0)),            # resident across the grid
            pl.BlockSpec((1, MROWS, MCOLS), lambda s: (s, 0, 0)),    # per-sample mask tile
            pl.BlockSpec((PROWS, PCOLS), lambda s: (0, 0)),          # resident packed params
        ],
        out_specs=pl.BlockSpec((1, ROWS8, 128), lambda s: (s, 0, 0)),
        compiler_params=pltpu.CompilerParams(
            dimension_semantics=("parallel",)),                      # megacore splits samples
    )(x2d, masks, packed)

    means = out_tiles[:, ::Q, 0:C_OUT]                               # rows {0, Q} -> (S, B, C_OUT)
    reg = _sum_of_square_reg(params)                                 # hoisted: params-only
    return means, reg, masks


def reference_forward(x_cat, x_range, params, mask_tiles):
    """Pure-JAX mirror of the torch forward, using the SAME dropout masks as the kernel."""
    emb = jnp.take(params["embedding"], x_cat, axis=0)
    x0 = jnp.transpose(jnp.concatenate([emb, x_range[..., None]], axis=-1),
                       (0, 2, 1)).astype(jnp.float32)                # (B, CIN, L) torch layout
    relu = lambda a: jnp.maximum(a, 0.0)

    def conv_block(xc, mvec, w, bias):                               # xc: (Cin, L)
        xd = xc * mvec[:, None]
        lo = xd.shape[1] - K + 1
        h = relu(bias[:, None] + sum(w[:, :, k] @ xd[:, k:k + lo] for k in range(K)))
        lp = lo - 2
        return jnp.maximum(jnp.maximum(h[:, 0:lp], h[:, 1:lp + 1]), h[:, 2:lp + 2])

    all_means = []
    for s in range(NUM_SAMPLES):
        Mt = mask_tiles[s]
        rows = []
        for b in range(B):
            m1 = Mt[R_M1 + b * SEG, 0:CIN]
            m3 = Mt[R_M3 + b * SEG, 0:NRK]
            h = conv_block(x0[b], m1, params["conv1_w"], params["conv1_b"])   # (NRK, LP1)
            h = conv_block(h, m3, params["conv3b_w"], params["conv3b_b"])     # (NRK, LP2)
            x3 = h.reshape(-1)                                                # torch .view: c*LP2+l
            m4 = Mt[R_M4 + b * SEG:R_M4 + b * SEG + LP2, 0:NRK].T.reshape(-1)
            x4 = relu((x3 * m4) @ params["lin4_w"].T + params["lin4_b"])
            m5 = Mt[R_M5 + b * Q, 0:HIDDEN]
            x5 = relu((x4 * m5) @ params["lin5_w"].T + params["lin5_b"])
            m6 = Mt[R_M6 + b * Q, 0:H10]
            rows.append((x5 * m6) @ params["lin6mu_w"].T + params["lin6mu_b"])
        all_means.append(jnp.stack(rows, axis=0))
    return jnp.stack(all_means, axis=0), _sum_of_square_reg(params)


def init_params(key):
    ks = jax.random.split(key, 12)

    def nrm(k, shape, scale=0.1):
        return scale * jax.random.normal(k, shape, jnp.float32)

    emb = nrm(ks[0], (NUM_FEATURES + 1, VALUE_EMB)).at[0].set(0.0)   # padding_idx=0
    return dict(
        embedding=emb,
        conv1_w=nrm(ks[1], (NRK, CIN, K)),
        conv1_b=nrm(ks[2], (NRK,)),
        conv3b_w=nrm(ks[3], (NRK, NRK, K)),
        conv3b_b=nrm(ks[4], (NRK,)),
        lin4_w=nrm(ks[5], (HIDDEN, LEN_LIN3)),
        lin4_b=nrm(ks[6], (HIDDEN,)),
        lin5_w=nrm(ks[7], (H10, HIDDEN)),
        lin5_b=nrm(ks[8], (H10,)),
        lin6mu_w=nrm(ks[9], (C_OUT, H10)),
        lin6mu_b=nrm(ks[10], (C_OUT,)),
        lin6lv_w=nrm(ks[11], (1, H10)),
        lin6lv_b=jnp.zeros((1,), jnp.float32),
    )


if __name__ == "__main__":
    key = jax.random.PRNGKey(0)
    kp, kx1, kx2, kd = jax.random.split(key, 4)
    params = init_params(kp)

    # parameter repack hoisted out of the per-call path: done ONCE here.
    packed = pack_params(params)

    x_cat = jax.random.randint(kx1, (B, SEQ_LEN), 0, NUM_FEATURES + 1)   # (B, seq_len) ids
    x_range = jax.random.normal(kx2, (B, SEQ_LEN), jnp.float32)          # (B, seq_len)

    means, reg, mask_tiles = stochastic_cnn_forward(x_cat, x_range, params, packed, kd)
    jax.block_until_ready((means, reg, mask_tiles))

    assert means.shape == (NUM_SAMPLES, B, C_OUT)

    ref_means, ref_reg = reference_forward(x_cat, x_range, params, mask_tiles)
    assert jnp.allclose(means, ref_means, atol=1e-4, rtol=1e-3), (means, ref_means)
    assert jnp.allclose(reg, ref_reg, atol=1e-6, rtol=1e-4), (reg, ref_reg)
    print("KERNEL_OK")
</pallas_src>

<mosaic_0001>
module attributes {stable_mosaic.version = 11 : i64} {
  func.func @_stoch_cnn_kernel(%arg0: i32, %arg1: memref<32x8xf32, #tpu.memory_space<vmem>>, %arg2: memref<1x112x128xf32, #tpu.memory_space<vmem>>, %arg3: memref<376x128xf32, #tpu.memory_space<vmem>>, %arg4: memref<1x8x128xf32, #tpu.memory_space<vmem>>) attributes {dimension_semantics = [#tpu.dimension_semantics<parallel>], iteration_bounds = array<i64: 8>, scalar_prefetch = 0 : i64, scratch_operands = 0 : i64, tpu.core_type = #tpu.core_type<tc>, window_params = [{pipeline_mode = #tpu.pipeline_mode<synchronous>, transform_indices = @transform_0, window_bounds = array<i64: 32, 8>}, {transform_indices = @transform_1, window_bounds = array<i64: 1, 112, 128>}, {pipeline_mode = #tpu.pipeline_mode<synchronous>, transform_indices = @transform_2, window_bounds = array<i64: 376, 128>}, {transform_indices = @transform_3, window_bounds = array<i64: 1, 8, 128>}]} {
    %c0 = arith.constant 0 : index
    %c0_0 = arith.constant 0 : index
    %0 = vector.load %arg1[%c0, %c0_0] : memref<32x8xf32, #tpu.memory_space<vmem>>, vector<32x8xf32>
    %c0_1 = arith.constant 0 : index
    %c0_2 = arith.constant 0 : index
    %c0_3 = arith.constant 0 : index
    %1 = vector.load %arg2[%c0_1, %c0_2, %c0_3] : memref<1x112x128xf32, #tpu.memory_space<vmem>>, vector<1x112x128xf32>
    %2 = vector.shape_cast %1 : vector<1x112x128xf32> to vector<112x128xf32>
    %c0_4 = arith.constant 0 : index
    %c0_5 = arith.constant 0 : index
    %3 = vector.load %arg3[%c0_4, %c0_5] : memref<376x128xf32, #tpu.memory_space<vmem>>, vector<376x128xf32>
    %4 = vector.extract_strided_slice %3 {offsets = [0, 0], sizes = [8, 20], strides = [1, 1]} : vector<376x128xf32> to vector<8x20xf32>
    %5 = vector.extract_strided_slice %3 {offsets = [8, 0], sizes = [8, 20], strides = [1, 1]} : vector<376x128xf32> to vector<8x20xf32>
    %6 = vector.extract_strided_slice %3 {offsets = [16, 0], sizes = [8, 20], strides = [1, 1]} : vector<376x128xf32> to vector<8x20xf32>
    %7 = vector.extract_strided_slice %3 {offsets = [24, 0], sizes = [1, 20], strides = [1, 1]} : vector<376x128xf32> to vector<1x20xf32>
    %8 = vector.extract_strided_slice %3 {offsets = [32, 0], sizes = [20, 20], strides = [1, 1]} : vector<376x128xf32> to vector<20x20xf32>
    %9 = vector.extract_strided_slice %3 {offsets = [56, 0], sizes = [20, 20], strides = [1, 1]} : vector<376x128xf32> to vector<20x20xf32>
    %10 = vector.extract_strided_slice %3 {offsets = [80, 0], sizes = [20, 20], strides = [1, 1]} : vector<376x128xf32> to vector<20x20xf32>
    %11 = vector.extract_strided_slice %3 {offsets = [104, 0], sizes = [1, 20], strides = [1, 1]} : vector<376x128xf32> to vector<1x20xf32>
    %12 = vector.extract_strided_slice %3 {offsets = [112, 0], sizes = [20, 40], strides = [1, 1]} : vector<376x128xf32> to vector<20x40xf32>
    %13 = vector.extract_strided_slice %3 {offsets = [136, 0], sizes = [20, 40], strides = [1, 1]} : vector<376x128xf32> to vector<20x40xf32>
    %14 = vector.extract_strided_slice %3 {offsets = [160, 0], sizes = [20, 40], strides = [1, 1]} : vector<376x128xf32> to vector<20x40xf32>
    %15 = vector.extract_strided_slice %3 {offsets = [184, 0], sizes = [20, 40], strides = [1, 1]} : vector<376x128xf32> to vector<20x40xf32>
    %16 = vector.extract_strided_slice %3 {offsets = [208, 0], sizes = [1, 40], strides = [1, 1]} : vector<376x128xf32> to vector<1x40xf32>
    %17 = vector.extract_strided_slice %3 {offsets = [216, 0], sizes = [40, 4], strides = [1, 1]} : vector<376x128xf32> to vector<40x4xf32>
    %18 = vector.extract_strided_slice %3 {offsets = [256, 0], sizes = [1, 4], strides = [1, 1]} : vector<376x128xf32> to vector<1x4xf32>
    %19 = vector.extract_strided_slice %3 {offsets = [264, 0], sizes = [4, 128], strides = [1, 1]} : vector<376x128xf32> to vector<4x128xf32>
    %20 = vector.extract_strided_slice %3 {offsets = [272, 0], sizes = [1, 128], strides = [1, 1]} : vector<376x128xf32> to vector<1x128xf32>
    %21 = vector.extract_strided_slice %3 {offsets = [280, 0], sizes = [8, 32], strides = [1, 1]} : vector<376x128xf32> to vector<8x32xf32>
    %22 = vector.extract_strided_slice %3 {offsets = [288, 0], sizes = [8, 32], strides = [1, 1]} : vector<376x128xf32> to vector<8x32xf32>
    %23 = vector.extract_strided_slice %3 {offsets = [296, 0], sizes = [8, 32], strides = [1, 1]} : vector<376x128xf32> to vector<8x32xf32>
    %24 = vector.extract_strided_slice %3 {offsets = [304, 0], sizes = [8, 32], strides = [1, 1]} : vector<376x128xf32> to vector<8x32xf32>
    %25 = vector.extract_strided_slice %3 {offsets = [312, 0], sizes = [32, 32], strides = [1, 1]} : vector<376x128xf32> to vector<32x32xf32>
    %26 = vector.extract_strided_slice %3 {offsets = [344, 0], sizes = [32, 32], strides = [1, 1]} : vector<376x128xf32> to vector<32x32xf32>
    %27 = vector.extract_strided_slice %2 {offsets = [0, 0], sizes = [32, 8], strides = [1, 1]} : vector<112x128xf32> to vector<32x8xf32>
    %28 = vector.extract_strided_slice %2 {offsets = [32, 0], sizes = [32, 20], strides = [1, 1]} : vector<112x128xf32> to vector<32x20xf32>
    %29 = vector.extract_strided_slice %2 {offsets = [64, 0], sizes = [32, 20], strides = [1, 1]} : vector<112x128xf32> to vector<32x20xf32>
    %30 = vector.extract_strided_slice %2 {offsets = [96, 0], sizes = [8, 40], strides = [1, 1]} : vector<112x128xf32> to vector<8x40xf32>
    %31 = vector.extract_strided_slice %2 {offsets = [104, 0], sizes = [8, 4], strides = [1, 1]} : vector<112x128xf32> to vector<8x4xf32>
    %32 = arith.mulf %0, %27 : vector<32x8xf32>
    %cst = arith.constant dense<0.000000e+00> : vector<32x20xf32>
    %33 = tpu.matmul %32, %4, %cst {dimension_numbers = #tpu.dot_dimension_numbers<[1], [0], [0], [1], [0, 0, 1, 1], [], []>} : vector<32x8xf32>, vector<8x20xf32>, vector<32x20xf32> -> vector<32x20xf32>
    %34 = vector.broadcast %7 : vector<1x20xf32> to vector<32x20xf32>
    %35 = arith.addf %34, %33 : vector<32x20xf32>
    %cst_6 = arith.constant dense<0.000000e+00> : vector<32x8xf32>
    %36 = tpu.matmul %25, %32, %cst_6 {dimension_numbers = #tpu.dot_dimension_numbers<[1], [0], [0], [1], [0, 0, 1, 1], [], []>} : vector<32x32xf32>, vector<32x8xf32>, vector<32x8xf32> -> vector<32x8xf32>
    %cst_7 = arith.constant dense<0.000000e+00> : vector<32x20xf32>
    %37 = tpu.matmul %36, %5, %cst_7 {dimension_numbers = #tpu.dot_dimension_numbers<[1], [0], [0], [1], [0, 0, 1, 1], [], []>} : vector<32x8xf32>, vector<8x20xf32>, vector<32x20xf32> -> vector<32x20xf32>
    %38 = arith.addf %35, %37 : vector<32x20xf32>
    %cst_8 = arith.constant dense<0.000000e+00> : vector<32x8xf32>
    %39 = tpu.matmul %26, %32, %cst_8 {dimension_numbers = #tpu.dot_dimension_numbers<[1], [0], [0], [1], [0, 0, 1, 1], [], []>} : vector<32x32xf32>, vector<32x8xf32>, vector<32x8xf32> -> vector<32x8xf32>
    %cst_9 = arith.constant dense<0.000000e+00> : vector<32x20xf32>
    %40 = tpu.matmul %39, %6, %cst_9 {dimension_numbers = #tpu.dot_dimension_numbers<[1], [0], [0], [1], [0, 0, 1, 1], [], []>} : vector<32x8xf32>, vector<8x20xf32>, vector<32x20xf32> -> vector<32x20xf32>
    %41 = arith.addf %38, %40 : vector<32x20xf32>
    %cst_10 = arith.constant 0.000000e+00 : f32
    %42 = vector.broadcast %cst_10 : f32 to vector<32x20xf32>
    %43 = arith.maximumf %41, %42 : vector<32x20xf32>
    %cst_11 = arith.constant dense<0.000000e+00> : vector<32x20xf32>
    %44 = tpu.matmul %25, %43, %cst_11 {dimension_numbers = #tpu.dot_dimension_numbers<[1], [0], [0], [1], [0, 0, 1, 1], [], []>} : vector<32x32xf32>, vector<32x20xf32>, vector<32x20xf32> -> vector<32x20xf32>
    %45 = arith.maximumf %43, %44 : vector<32x20xf32>
    %cst_12 = arith.constant dense<0.000000e+00> : vector<32x20xf32>
    %46 = tpu.matmul %26, %43, %cst_12 {dimension_numbers = #tpu.dot_dimension_numbers<[1], [0], [0], [1], [0, 0, 1, 1], [], []>} : vector<32x32xf32>, vector<32x20xf32>, vector<32x20xf32> -> vector<32x20xf32>
    %47 = arith.maximumf %45, %46 : vector<32x20xf32>
    %48 = arith.mulf %47, %28 : vector<32x20xf32>
    %cst_13 = arith.constant dense<0.000000e+00> : vector<32x20xf32>
    %49 = tpu.matmul %48, %8, %cst_13 {dimension_numbers = #tpu.dot_dimension_numbers<[1], [0], [0], [1], [0, 0, 1, 1], [], []>} : vector<32x20xf32>, vector<20x20xf32>, vector<32x20xf32> -> vector<32x20xf32>
    %50 = vector.broadcast %11 : vector<1x20xf32> to vector<32x20xf32>
    %51 = arith.addf %50, %49 : vector<32x20xf32>
    %cst_14 = arith.constant dense<0.000000e+00> : vector<32x20xf32>
    %52 = tpu.matmul %25, %48, %cst_14 {dimension_numbers = #tpu.dot_dimension_numbers<[1], [0], [0], [1], [0, 0, 1, 1], [], []>} : vector<32x32xf32>, vector<32x20xf32>, vector<32x20xf32> -> vector<32x20xf32>
    %cst_15 = arith.constant dense<0.000000e+00> : vector<32x20xf32>
    %53 = tpu.matmul %52, %9, %cst_15 {dimension_numbers = #tpu.dot_dimension_numbers<[1], [0], [0], [1], [0, 0, 1, 1], [], []>} : vector<32x20xf32>, vector<20x20xf32>, vector<32x20xf32> -> vector<32x20xf32>
    %54 = arith.addf %51, %53 : vector<32x20xf32>
    %cst_16 = arith.constant dense<0.000000e+00> : vector<32x20xf32>
    %55 = tpu.matmul %26, %48, %cst_16 {dimension_numbers = #tpu.dot_dimension_numbers<[1], [0], [0], [1], [0, 0, 1, 1], [], []>} : vector<32x32xf32>, vector<32x20xf32>, vector<32x20xf32> -> vector<32x20xf32>
    %cst_17 = arith.constant dense<0.000000e+00> : vector<32x20xf32>
    %56 = tpu.matmul %55, %10, %cst_17 {dimension_numbers = #tpu.dot_dimension_numbers<[1], [0], [0], [1], [0, 0, 1, 1], [], []>} : vector<32x20xf32>, vector<20x20xf32>, vector<32x20xf32> -> vector<32x20xf32>
    %57 = arith.addf %54, %56 : vector<32x20xf32>
    %cst_18 = arith.constant 0.000000e+00 : f32
    %58 = vector.broadcast %cst_18 : f32 to vector<32x20xf32>
    %59 = arith.maximumf %57, %58 : vector<32x20xf32>
    %cst_19 = arith.constant dense<0.000000e+00> : vector<32x20xf32>
    %60 = tpu.matmul %25, %59, %cst_19 {dimension_numbers = #tpu.dot_dimension_numbers<[1], [0], [0], [1], [0, 0, 1, 1], [], []>} : vector<32x32xf32>, vector<32x20xf32>, vector<32x20xf32> -> vector<32x20xf32>
    %61 = arith.maximumf %59, %60 : vector<32x20xf32>
    %cst_20 = arith.constant dense<0.000000e+00> : vector<32x20xf32>
    %62 = tpu.matmul %26, %59, %cst_20 {dimension_numbers = #tpu.dot_dimension_numbers<[1], [0], [0], [1], [0, 0, 1, 1], [], []>} : vector<32x32xf32>, vector<32x20xf32>, vector<32x20xf32> -> vector<32x20xf32>
    %63 = arith.maximumf %61, %62 : vector<32x20xf32>
    %64 = arith.mulf %63, %29 : vector<32x20xf32>
    %cst_21 = arith.constant dense<0.000000e+00> : vector<8x20xf32>
    %65 = tpu.matmul %21, %64, %cst_21 {dimension_numbers = #tpu.dot_dimension_numbers<[1], [0], [0], [1], [0, 0, 1, 1], [], []>} : vector<8x32xf32>, vector<32x20xf32>, vector<8x20xf32> -> vector<8x20xf32>
    %cst_22 = arith.constant dense<0.000000e+00> : vector<8x40xf32>
    %66 = tpu.matmul %65, %12, %cst_22 {dimension_numbers = #tpu.dot_dimension_numbers<[1], [0], [0], [1], [0, 0, 1, 1], [], []>} : vector<8x20xf32>, vector<20x40xf32>, vector<8x40xf32> -> vector<8x40xf32>
    %67 = vector.broadcast %16 : vector<1x40xf32> to vector<8x40xf32>
    %68 = arith.addf %67, %66 : vector<8x40xf32>
    %cst_23 = arith.constant dense<0.000000e+00> : vector<8x20xf32>
    %69 = tpu.matmul %22, %64, %cst_23 {dimension_numbers = #tpu.dot_dimension_numbers<[1], [0], [0], [1], [0, 0, 1, 1], [], []>} : vector<8x32xf32>, vector<32x20xf32>, vector<8x20xf32> -> vector<8x20xf32>
    %cst_24 = arith.constant dense<0.000000e+00> : vector<8x40xf32>
    %70 = tpu.matmul %69, %13, %cst_24 {dimension_numbers = #tpu.dot_dimension_numbers<[1], [0], [0], [1], [0, 0, 1, 1], [], []>} : vector<8x20xf32>, vector<20x40xf32>, vector<8x40xf32> -> vector<8x40xf32>
    %71 = arith.addf %68, %70 : vector<8x40xf32>
    %cst_25 = arith.constant dense<0.000000e+00> : vector<8x20xf32>
    %72 = tpu.matmul %23, %64, %cst_25 {dimension_numbers = #tpu.dot_dimension_numbers<[1], [0], [0], [1], [0, 0, 1, 1], [], []>} : vector<8x32xf32>, vector<32x20xf32>, vector<8x20xf32> -> vector<8x20xf32>
    %cst_26 = arith.constant dense<0.000000e+00> : vector<8x40xf32>
    %73 = tpu.matmul %72, %14, %cst_26 {dimension_numbers = #tpu.dot_dimension_numbers<[1], [0], [0], [1], [0, 0, 1, 1], [], []>} : vector<8x20xf32>, vector<20x40xf32>, vector<8x40xf32> -> vector<8x40xf32>
    %74 = arith.addf %71, %73 : vector<8x40xf32>
    %cst_27 = arith.constant dense<0.000000e+00> : vector<8x20xf32>
    %75 = tpu.matmul %24, %64, %cst_27 {dimension_numbers = #tpu.dot_dimension_numbers<[1], [0], [0], [1], [0, 0, 1, 1], [], []>} : vector<8x32xf32>, vector<32x20xf32>, vector<8x20xf32> -> vector<8x20xf32>
    %cst_28 = arith.constant dense<0.000000e+00> : vector<8x40xf32>
    %76 = tpu.matmul %75, %15, %cst_28 {dimension_numbers = #tpu.dot_dimension_numbers<[1], [0], [0], [1], [0, 0, 1, 1], [], []>} : vector<8x20xf32>, vector<20x40xf32>, vector<8x40xf32> -> vector<8x40xf32>
    %77 = arith.addf %74, %76 : vector<8x40xf32>
    %cst_29 = arith.constant 0.000000e+00 : f32
    %78 = vector.broadcast %cst_29 : f32 to vector<8x40xf32>
    %79 = arith.maximumf %77, %78 : vector<8x40xf32>
    %80 = arith.mulf %79, %30 : vector<8x40xf32>
    %cst_30 = arith.constant dense<0.000000e+00> : vector<8x4xf32>
    %81 = tpu.matmul %80, %17, %cst_30 {dimension_numbers = #tpu.dot_dimension_numbers<[1], [0], [0], [1], [0, 0, 1, 1], [], []>} : vector<8x40xf32>, vector<40x4xf32>, vector<8x4xf32> -> vector<8x4xf32>
    %82 = vector.broadcast %18 : vector<1x4xf32> to vector<8x4xf32>
    %83 = arith.addf %81, %82 : vector<8x4xf32>
    %cst_31 = arith.constant 0.000000e+00 : f32
    %84 = vector.broadcast %cst_31 : f32 to vector<8x4xf32>
    %85 = arith.maximumf %83, %84 : vector<8x4xf32>
    %86 = arith.mulf %85, %31 : vector<8x4xf32>
    %cst_32 = arith.constant dense<0.000000e+00> : vector<8x128xf32>
    %87 = tpu.matmul %86, %19, %cst_32 {dimension_numbers = #tpu.dot_dimension_numbers<[1], [0], [0], [1], [0, 0, 1, 1], [], []>} : vector<8x4xf32>, vector<4x128xf32>, vector<8x128xf32> -> vector<8x128xf32>
    %88 = vector.broadcast %20 : vector<1x128xf32> to vector<8x128xf32>
    %89 = arith.addf %87, %88 : vector<8x128xf32>
    %c0_33 = arith.constant 0 : index
    %c0_34 = arith.constant 0 : index
    %c0_35 = arith.constant 0 : index
    %90 = vector.load %arg4[%c0_33, %c0_34, %c0_35] : memref<1x8x128xf32, #tpu.memory_space<vmem>>, vector<1x8x128xf32>
    %91 = vector.shape_cast %90 : vector<1x8x128xf32> to vector<8x128xf32>
    %92 = vector.shape_cast %89 : vector<8x128xf32> to vector<1x8x128xf32>
    tpu.vector_store %arg4[%c0_33, %c0_34, %c0_35], %92 {strides = array<i32>} : memref<1x8x128xf32, #tpu.memory_space<vmem>>, vector<1x8x128xf32>,
    return
  }
  func.func @transform_0(%arg0: i32) -> (i32, i32) {
    %c0_i32 = arith.constant 0 : i32
    %c0_i32_0 = arith.constant 0 : i32
    %c0_i32_1 = arith.constant 0 : i32
    return %c0_i32, %c0_i32_0 : i32, i32
  }
  func.func @transform_1(%arg0: i32) -> (i32, i32, i32) {
    %c0_i32 = arith.constant 0 : i32
    %c0_i32_0 = arith.constant 0 : i32
    %c0_i32_1 = arith.constant 0 : i32
    return %arg0, %c0_i32, %c0_i32_0 : i32, i32, i32
  }
  func.func @transform_2(%arg0: i32) -> (i32, i32) {
    %c0_i32 = arith.constant 0 : i32
    %c0_i32_0 = arith.constant 0 : i32
    %c0_i32_1 = arith.constant 0 : i32
    return %c0_i32, %c0_i32_0 : i32, i32
  }
  func.func @transform_3(%arg0: i32) -> (i32, i32, i32) {
    %c0_i32 = arith.constant 0 : i32
    %c0_i32_0 = arith.constant 0 : i32
    %c0_i32_1 = arith.constant 0 : i32
    return %arg0, %c0_i32, %c0_i32_0 : i32, i32, i32
  }
}

</mosaic_0001>

<llo_original>
// kernel: stochastic_cnn_forward.3
$region0: #{stochastic_cnn_forward.3}
  #allocation0 [shape = 'u32[]', space=smem, size = 0x4, offset = 0x4, fixed_abs, tag = 'smem constant byte address 0x4 - core index']
  #allocation1 [shape = 'u32[144,128]{1,0:T(1,128)}', space=vmem, size = 0x12000, scoped, tag = 'internal scratch']
  %s0 = inlined_call_operand.vmem [shape: f32[32,8], index: 0, kind: input, shape index: {}]
  %s1 = inlined_call_operand.vmem [shape: f32[8,112,128], index: 1, kind: input, shape index: {}]
  %s2 = inlined_call_operand.vmem [shape: f32[376,128], index: 2, kind: input, shape index: {}]
  %s3 = inlined_call_operand.vmem [shape: f32[8,8,128], index: 3, kind: output, shape index: {}]
  %s4 = sld [smem:[#allocation0]]
  $region45: #{stochastic_cnn_forward.3} parent=0
    _
  %s6 = ssub.s32 1, %s4
  %s7 = scalar_select 0, %s6, %s4
  loop: start=0, step=1, limit=10
  $region2: #{stochastic_cnn_forward.3} parent=0 // loop_pre_header
    _
  $region3: #{stochastic_cnn_forward.3} parent=0 // loop_header
    %s9 = sphi 0, %s13
    %p10 = scmp.ge.s32.totalorder %s9, 10
    %s17 = sphi 0, %s17
    %s19 = sphi 0, %s17
    %s20 = sphi 0, %s19
    %s34 = sphi 0, %s20
    %s40 = sphi 0, %s42
    %s43 = sphi 0, %s40
    %s44 = sphi 0, %s43
    %s60 = sphi 0, %s44
    %s64 = sphi 0, %s64
    %s66 = sphi 0, %s64
    %s67 = sphi 0, %s66
    %s81 = sphi 0, %s67
    %s87 = sphi 0, %s89
    %s90 = sphi 0, %s87
    %s91 = sphi 0, %s90
    %s107 = sphi 0, %s91
  $region4: #{stochastic_cnn_forward.3} parent=0 // loop_header_branch
    %12 = sbr.rel (%p10) target = $region8
  $region5: #{stochastic_cnn_forward.3} parent=0 // loop_body
    %s14 = ssub.s32 %s9, 1
    %s15 = ssub.s32 %s9, 2
    %s16 = sadd.s32 %s9, 1
    %s18 = sadd.s32 %s17, 1
    %p21 = scmp.eq.s32.totalorder %s9, 7
    %p22 = scmp.ne.s32.totalorder %s17, %s19
    %p23 = scmp.eq.s32.totalorder %s9, 0
    %p24 = por %p22, %p23
    %p25 = scmp.ne.s32.totalorder %s17, %s19
    %p26 = scmp.eq.s32.totalorder %s14, 7
    %p27 = por %p25, %p26
    %p28 = scmp.ne.s32.totalorder %s19, %s20
    %p29 = scmp.eq.s32.totalorder %s14, 0
    %p30 = por %p28, %p29
    %p31 = scmp.ne.s32.totalorder %s19, %s20
    %p32 = scmp.eq.s32.totalorder %s15, 7
    %p33 = por %p31, %p32
    %p35 = scmp.ne.s32.totalorder %s20, %s34
    %p36 = scmp.eq.s32.totalorder %s15, 0
    %p37 = por %p35, %p36
    %s38 = ssub.s32 %s9, %s16
    %p39 = scmp.eq.s32.totalorder %s38, 0
    %s41 = sadd.s32 %s40, 1
    %s42 = scalar_select %p39, %s40, %s41
    %p45 = pneg %p39
    %p46 = scmp.eq.s32.totalorder %s9, 7
    %p47 = por %p45, %p46
    %p48 = scmp.ne.s32.totalorder %s40, %s43
    %p49 = scmp.eq.s32.totalorder %s9, 0
    %p50 = por %p48, %p49
    %p51 = scmp.ne.s32.totalorder %s40, %s43
    %p52 = scmp.eq.s32.totalorder %s14, 7
    %p53 = por %p51, %p52
    %p54 = scmp.ne.s32.totalorder %s43, %s44
    %p55 = scmp.eq.s32.totalorder %s14, 0
    %p56 = por %p54, %p55
    %p57 = scmp.ne.s32.totalorder %s43, %s44
    %p58 = scmp.eq.s32.totalorder %s15, 7
    %p59 = por %p57, %p58
    %p61 = scmp.ne.s32.totalorder %s44, %s60
    %p62 = scmp.eq.s32.totalorder %s15, 0
    %p63 = por %p61, %p62
    %s65 = sadd.s32 %s64, 1
    %p68 = scmp.eq.s32.totalorder %s9, 7
    %p69 = scmp.ne.s32.totalorder %s64, %s66
    %p70 = scmp.eq.s32.totalorder %s9, 0
    %p71 = por %p69, %p70
    %p72 = scmp.ne.s32.totalorder %s64, %s66
    %p73 = scmp.eq.s32.totalorder %s14, 7
    %p74 = por %p72, %p73
    %p75 = scmp.ne.s32.totalorder %s66, %s67
    %p76 = scmp.eq.s32.totalorder %s14, 0
    %p77 = por %p75, %p76
    %p78 = scmp.ne.s32.totalorder %s66, %s67
    %p79 = scmp.eq.s32.totalorder %s15, 7
    %p80 = por %p78, %p79
    %p82 = scmp.ne.s32.totalorder %s67, %s81
    %p83 = scmp.eq.s32.totalorder %s15, 0
    %p84 = por %p82, %p83
    %s85 = ssub.s32 %s9, %s16
    %p86 = scmp.eq.s32.totalorder %s85, 0
    %s88 = sadd.s32 %s87, 1
    %s89 = scalar_select %p86, %s87, %s88
    %p92 = pneg %p86
    %p93 = scmp.eq.s32.totalorder %s9, 7
    %p94 = por %p92, %p93
    %p95 = scmp.ne.s32.totalorder %s87, %s90
    %p96 = scmp.eq.s32.totalorder %s9, 0
    %p97 = por %p95, %p96
    %p98 = scmp.ne.s32.totalorder %s87, %s90
    %p99 = scmp.eq.s32.totalorder %s14, 7
    %p100 = por %p98, %p99
    %p101 = scmp.ne.s32.totalorder %s90, %s91
    %p102 = scmp.eq.s32.totalorder %s14, 0
    %p103 = por %p101, %p102
    %p104 = scmp.ne.s32.totalorder %s90, %s91
    %p105 = scmp.eq.s32.totalorder %s15, 7
    %p106 = por %p104, %p105
    %p108 = scmp.ne.s32.totalorder %s91, %s107
    %p109 = scmp.eq.s32.totalorder %s15, 0
    %p110 = por %p108, %p109
    %p111 = scmp.le.s32.totalorder 1, %s9
    %p112 = scmp.lt.s32.totalorder %s9, 9
    %p113 = pnand %p111, %p112
    %p114 = pneg %p113
    // Predicated region
    $region9: #{stochastic_cnn_forward.3} parent=5 // pred_check
      _
    $region10: #{stochastic_cnn_forward.3} parent=5 // pred_check_branch
      %116 = sbr.rel (%p113) target = $region12
    $region11: #{stochastic_cnn_forward.3} parent=5 // pred_region
      %s117 = ssub.s32 %s9, 1
      // Predicated region
      $region13: #{stochastic_cnn_forward.3} parent=11 // pred_check
        %p118 = pneg %p30
      $region14: #{stochastic_cnn_forward.3} parent=11 // pred_check_branch
        %120 = sbr.rel (%p118) target = $region16
      $region15: #{stochastic_cnn_forward.3} parent=11 // pred_region
        _
      $region16: #{stochastic_cnn_forward.3} parent=11 // pred_fallthru
        _
      // Predicated region
      $region17: #{stochastic_cnn_forward.3} parent=11 // pred_check
        %p121 = pneg %p77
      $region18: #{stochastic_cnn_forward.3} parent=11 // pred_check_branch
        %123 = sbr.rel (%p121) target = $region20
      $region19: #{stochastic_cnn_forward.3} parent=11 // pred_region
        _
      $region20: #{stochastic_cnn_forward.3} parent=11 // pred_fallthru
        _
    $region12: #{stochastic_cnn_forward.3} parent=5 // pred_fallthru
      _
    %p124 = scmp.lt.s32.totalorder %s9, 8
    // Predicated region
    $region21: #{stochastic_cnn_forward.3} parent=5 // pred_check
      %p125 = pneg %p124
    $region22: #{stochastic_cnn_forward.3} parent=5 // pred_check_branch
      %127 = sbr.rel (%p125) target = $region24
    $region23: #{stochastic_cnn_forward.3} parent=5 // pred_region
      // Predicated region
      $region25: #{stochastic_cnn_forward.3} parent=23 // pred_check
        %p128 = pneg %p50
      $region26: #{stochastic_cnn_forward.3} parent=23 // pred_check_branch
        %130 = sbr.rel (%p128) target = $region28
      $region27: #{stochastic_cnn_forward.3} parent=23 // pred_region
        %p131 = scmp.lt.s32.totalorder %s9, 7
        %s132 = scalar_select %p131, %s9, 7
        %s133 = smul.addr %s132, 14
        %s134 = smul.addr %s133, 8
        %s135 = scalar_lea.vmem %s1, %s134
      $region28: #{stochastic_cnn_forward.3} parent=23 // pred_fallthru
        _
    $region24: #{stochastic_cnn_forward.3} parent=5 // pred_fallthru
      _
    %p136 = scmp.le.s32.totalorder 1, %s9
    %p137 = scmp.lt.s32.totalorder %s9, 9
    %p138 = pnand %p136, %p137
    %p139 = pneg %p138
    // Predicated region
    $region29: #{stochastic_cnn_forward.3} parent=5 // pred_check
      _
    $region30: #{stochastic_cnn_forward.3} parent=5 // pred_check_branch
      %141 = sbr.rel (%p138) target = $region32
    $region31: #{stochastic_cnn_forward.3} parent=5 // pred_region
      %s142 = ssub.s32 %s9, 1
      %p143 = pneg %p30
      %p144 = pneg %p27
      %p145 = scmp.lt.s32.totalorder %s14, 7
      %s146 = scalar_select %p145, %s14, 7
      %s147 = smul.addr %s146, 14
      %s148 = smul.addr %s147, 8
      %s149 = scalar_lea.vmem %s1, %s148
      %p150 = pneg %p56
      %p151 = pneg %p53
      %p152 = pneg %p77
      %p153 = pneg %p74
      %p154 = pneg %p103
      %p155 = pneg %p100
      %p156 = scmp.lt.s32.totalorder %s14, 7
      %s157 = scalar_select %p156, %s14, 7
      %s158 = smul.addr %s157, 8
      %s159 = scalar_lea.vmem %s3, %s158
      %p160 = scmp.lt.s32.totalorder %s14, 7
      %s161 = scalar_select %p160, %s14, 7
      %s162 = smul.addr %s161, 14
      %s163 = smul.addr %s162, 8
      %s164 = scalar_lea.vmem %s1, %s163
      %p165 = scmp.lt.s32.totalorder %s14, 7
      %s166 = scalar_select %p165, %s14, 7
      %s167 = smul.addr %s166, 8
      %s168 = scalar_lea.vmem %s3, %s167
      %v169 = vld [vmem:[%s0] sm:$0xff]
      %v170 = vld [vmem:[%s0 + $0x8] sm:$0xff]
      %v171 = vld [vmem:[%s0 + $0x10] sm:$0xff]
      %v172 = vld [vmem:[%s0 + $0x18] sm:$0xff]
      %v173 = vld [vmem:[%s164] sm:$0xff]
      %v174 = vld [vmem:[%s164 + $0x8] sm:$0xff]
      %v175 = vld [vmem:[%s164 + $0x10] sm:$0xff]
      %v176 = vld [vmem:[%s164 + $0x18] sm:$0xff]
      %v177 = vld [vmem:[%s164 + $0x20] sm:$0xff]
      %v178 = vld [vmem:[%s164 + $0x28] sm:$0xff]
      %v179 = vld [vmem:[%s164 + $0x30] sm:$0xff]
      %v180 = vld [vmem:[%s164 + $0x38] sm:$0xff]
      %v181 = vld [vmem:[%s164 + $0x40] sm:$0xff]
      %v182 = vld [vmem:[%s164 + $0x48] sm:$0xff]
      %v183 = vld [vmem:[%s164 + $0x50] sm:$0xff]
      %v184 = vld [vmem:[%s164 + $0x58] sm:$0xff]
      %v185 = vld [vmem:[%s164 + $0x60] sm:$0xff]
      %v186 = vld [vmem:[%s164 + $0x68] sm:$0xff]
      %v187 = vld [vmem:[%s2] sm:$0xff]
      %v188 = vld [vmem:[%s2 + $0x8] sm:$0xff]
      %v189 = vld [vmem:[%s2 + $0x10] sm:$0xff]
      %v190 = vld [vmem:[%s2 + $0x18] sm:$0xff]
      %v191 = vld [vmem:[%s2 + $0x20] sm:$0xff]
      %v192 = vld [vmem:[%s2 + $0x28] sm:$0xff]
      %v193 = vld [vmem:[%s2 + $0x30] sm:$0xff]
      %v194 = vld [vmem:[%s2 + $0x38] sm:$0xff]
      %v195 = vld [vmem:[%s2 + $0x40] sm:$0xff]
      %v196 = vld [vmem:[%s2 + $0x48] sm:$0xff]
      %v197 = vld [vmem:[%s2 + $0x50] sm:$0xff]
      %v198 = vld [vmem:[%s2 + $0x58] sm:$0xff]
      %v199 = vld [vmem:[%s2 + $0x60] sm:$0xff]
      %v200 = vld [vmem:[%s2 + $0x68] sm:$0xff]
      %v201 = vld [vmem:[%s2 + $0x70] sm:$0xff]
      %v202 = vld [vmem:[%s2 + $0x78] sm:$0xff]
      %v203 = vld [vmem:[%s2 + $0x80] sm:$0xff]
      %v204 = vld [vmem:[%s2 + $0x88] sm:$0xff]
      %v205 = vld [vmem:[%s2 + $0x90] sm:$0xff]
      %v206 = vld [vmem:[%s2 + $0x98] sm:$0xff]
      %v207 = vld [vmem:[%s2 + $0xa0] sm:$0xff]
      %v208 = vld [vmem:[%s2 + $0xa8] sm:$0xff]
      %v209 = vld [vmem:[%s2 + $0xb0] sm:$0xff]
      %v210 = vld [vmem:[%s2 + $0xb8] sm:$0xff]
      %v211 = vld [vmem:[%s2 + $0xc0] sm:$0xff]
      %v212 = vld [vmem:[%s2 + $0xc8] sm:$0xff]
      %v213 = vld [vmem:[%s2 + $0xd0] sm:$0xff]
      %v214 = vld [vmem:[%s2 + $0xd8] sm:$0xff]
      %v215 = vld [vmem:[%s2 + $0xe0] sm:$0xff]
      %v216 = vld [vmem:[%s2 + $0xe8] sm:$0xff]
      %v217 = vld [vmem:[%s2 + $0xf0] sm:$0xff]
      %v218 = vld [vmem:[%s2 + $0xf8] sm:$0xff]
      %v219 = vld [vmem:[%s2 + $0x100] sm:$0xff]
      %v220 = vld [vmem:[%s2 + $0x108] sm:$0xff]
      %v221 = vld [vmem:[%s2 + $0x110] sm:$0xff]
      %v222 = vld [vmem:[%s2 + $0x118] sm:$0xff]
      %v223 = vld [vmem:[%s2 + $0x120] sm:$0xff]
      %v224 = vld [vmem:[%s2 + $0x128] sm:$0xff]
      %v225 = vld [vmem:[%s2 + $0x130] sm:$0xff]
      %v226 = vld [vmem:[%s2 + $0x138] sm:$0xff]
      %v227 = vld [vmem:[%s2 + $0x140] sm:$0xff]
      %v228 = vld [vmem:[%s2 + $0x148] sm:$0xff]
      %v229 = vld [vmem:[%s2 + $0x150] sm:$0xff]
      %v230 = vld [vmem:[%s2 + $0x158] sm:$0xff]
      %v231 = vld [vmem:[%s2 + $0x160] sm:$0xff]
      %v232 = vld [vmem:[%s2 + $0x168] sm:$0xff]
      %v233 = vld [vmem:[%s2 + $0x170] sm:$0xff]
      %v234 = vmul.f32 %v169, %v173
      %v235 = vmul.f32 %v170, %v174
      %v236 = vmul.f32 %v171, %v175
      %v237 = vmul.f32 %v172, %v176
      %vm238 = vcmask 64512
      %v240 = vsel %vm238, %v234, 0
      %v243 = vsel %vm238, %v235, 0
      %v246 = vsel %vm238, %v236, 0
      %v249 = vsel %vm238, %v237, 0
      %251 = vmatprep.subr.mxu0 0.0
      %252 = vmatpush1.msra.mxu0 0.0
      %253 = vmatprep.subr.mxu0 0.0
      %254 = vmatpush1.msra.mxu0 0.0
      %255 = vmatprep.subr.mxu0 0.0
      %256 = vmatpush1.msra.mxu0 0.0
      %257 = vmatprep.subr.mxu0 0.0
      %258 = vmatpush1.msra.mxu0 0.0
      %259 = vmatprep.subr.mxu0 0.0
      %260 = vmatpush1.msra.mxu0 0.0
      %261 = vmatprep.subr.mxu0 0.0
      %262 = vmatpush1.msra.mxu0 0.0
      %263 = vmatprep.subr.mxu0 0.0
      %264 = vmatpush1.msra.mxu0 0.0
      %265 = vmatprep.subr.mxu0 0.0
      %266 = vmatpush1.msra.mxu0 0.0
      %267 = vmatprep.subr.mxu0 0.0
      %268 = vmatpush1.msra.mxu0 0.0
      %269 = vmatprep.subr.mxu0 0.0
      %270 = vmatpush1.msra.mxu0 0.0
      %271 = vmatprep.subr.mxu0 0.0
      %272 = vmatpush1.msra.mxu0 0.0
      %273 = vmatprep.subr.mxu0 0.0
      %274 = vmatpush1.msra.mxu0 0.0
      %275 = vmatprep.subr.mxu0 0.0
      %276 = vmatpush1.msra.mxu0 0.0
      %277 = vmatprep.subr.mxu0 0.0
      %278 = vmatpush1.msra.mxu0 0.0
      %279 = vmatprep.subr.mxu0 0.0
      %280 = vmatpush1.msra.mxu0 0.0
      %281 = vmatprep.subr.mxu0 0.0
      %282 = vmatpush1.msra.mxu0 %v187
      %283 = vmatprep.subr.mxu0 0.0
      %284 = vmatpush2.msra.mxu0 0.0
      %285 = vmatprep.subr.mxu0 0.0
      %286 = vmatpush2.msra.mxu0 0.0
      %287 = vmatprep.subr.mxu0 0.0
      %288 = vmatpush2.msra.mxu0 0.0
      %289 = vmatprep.subr.mxu0 0.0
      %290 = vmatpush2.msra.mxu0 0.0
      %291 = vmatprep.subr.mxu0 0.0
      %292 = vmatpush2.msra.mxu0 0.0
      %293 = vmatprep.subr.mxu0 0.0
      %294 = vmatpush2.msra.mxu0 0.0
      %295 = vmatprep.subr.mxu0 0.0
      %296 = vmatpush2.msra.mxu0 0.0
      %297 = vmatprep.subr.mxu0 0.0
      %298 = vmatpush2.msra.mxu0 0.0
      %299 = vmatprep.subr.mxu0 0.0
      %300 = vmatpush2.msra.mxu0 0.0
      %301 = vmatprep.subr.mxu0 0.0
      %302 = vmatpush2.msra.mxu0 0.0
      %303 = vmatprep.subr.mxu0 0.0
      %304 = vmatpush2.msra.mxu0 0.0
      %305 = vmatprep.subr.mxu0 0.0
      %306 = vmatpush2.msra.mxu0 0.0
      %307 = vmatprep.subr.mxu0 0.0
      %308 = vmatpush2.msra.mxu0 0.0
      %309 = vmatprep.subr.mxu0 0.0
      %310 = vmatpush2.msra.mxu0 0.0
      %311 = vmatprep.subr.mxu0 0.0
      %312 = vmatpush2.msra.mxu0 0.0
      %313 = vmatprep.subr.mxu0 0.0
      %314 = vmatpush2.msra.mxu0 0.0
      %315 = vmatprep.mubr.f32.mxu0 0.0
      %316 = vmatmul.mubr.f32.gmra.mxu0 %v240
      %v317 = vpop.f32.mrf.mxu0
      %v318 = vadd.f32 0.0, %v317
      %v319 = vpop.f32.mrf.mxu0
      %320 = vmatprep.mubr.f32.mxu0 0.0
      %321 = vmatmul.mubr.f32.gmra.mxu0 %v243
      %v322 = vpop.f32.mrf.mxu0
      %v323 = vadd.f32 0.0, %v322
      %v324 = vpop.f32.mrf.mxu0
      %325 = vmatprep.mubr.f32.mxu0 0.0
      %326 = vmatmul.mubr.f32.gmra.mxu0 %v246
      %v327 = vpop.f32.mrf.mxu0
      %v328 = vadd.f32 0.0, %v327
      %v329 = vpop.f32.mrf.mxu0
      %330 = vmatprep.mubr.f32.mxu0 0.0
      %331 = vmatmul.mubr.f32.gmra.mxu0 %v249
      %v332 = vpop.f32.mrf.mxu0
      %v333 = vadd.f32 0.0, %v332
      %v334 = vpop.f32.mrf.mxu0
      %335 = vdwg.mxu0
      %v336 = vlaneseq
      %v337 = vshrl.u32 %v336, 7
      %v338 = vsub.s32 0, %v337
      %v339 = vrot.slane %v190, %v338
      %v340 = vadd.f32 %v339, %v318
      %v341 = vadd.f32 %v339, %v323
      %v342 = vadd.f32 %v339, %v328
      %v343 = vadd.f32 %v339, %v333
      %vm344 = vcmask 261120
      %v346 = vsel %vm344, %v226, 0
      %v349 = vsel %vm344, %v227, 0
      %v352 = vsel %vm344, %v228, 0
      %v355 = vsel %vm344, %v229, 0
      %357 = vmatprep.subr.mxu0 0.0
      %358 = vmatpush1.msra.mxu0 0.0
      %359 = vmatprep.subr.mxu0 0.0
      %360 = vmatpush1.msra.mxu0 0.0
      %361 = vmatprep.subr.mxu0 0.0
      %362 = vmatpush1.msra.mxu0 0.0
      %363 = vmatprep.subr.mxu0 0.0
      %364 = vmatpush1.msra.mxu0 0.0
      %365 = vmatprep.subr.mxu0 0.0
      %366 = vmatpush1.msra.mxu0 0.0
      %367 = vmatprep.subr.mxu0 0.0
      %368 = vmatpush1.msra.mxu0 0.0
      %369 = vmatprep.subr.mxu0 0.0
      %370 = vmatpush1.msra.mxu0 0.0
      %371 = vmatprep.subr.mxu0 0.0
      %372 = vmatpush1.msra.mxu0 0.0
      %373 = vmatprep.subr.mxu0 0.0
      %374 = vmatpush1.msra.mxu0 0.0
      %375 = vmatprep.subr.mxu0 0.0
      %376 = vmatpush1.msra.mxu0 0.0
      %377 = vmatprep.subr.mxu0 0.0
      %378 = vmatpush1.msra.mxu0 0.0
      %379 = vmatprep.subr.mxu0 0.0
      %380 = vmatpush1.msra.mxu0 0.0
      %381 = vmatprep.subr.mxu0 0.0
      %382 = vmatpush1.msra.mxu0 %v237
      %383 = vmatprep.subr.mxu0 0.0
      %384 = vmatpush1.msra.mxu0 %v236
      %385 = vmatprep.subr.mxu0 0.0
      %386 = vmatpush1.msra.mxu0 %v235
      %387 = vmatprep.subr.mxu0 0.0
      %388 = vmatpush1.msra.mxu0 %v234
      %389 = vmatprep.subr.mxu0 0.0
      %390 = vmatpush2.msra.mxu0 0.0
      %391 = vmatprep.subr.mxu0 0.0
      %392 = vmatpush2.msra.mxu0 0.0
      %393 = vmatprep.subr.mxu0 0.0
      %394 = vmatpush2.msra.mxu0 0.0
      %395 = vmatprep.subr.mxu0 0.0
      %396 = vmatpush2.msra.mxu0 0.0
      %397 = vmatprep.subr.mxu0 0.0
      %398 = vmatpush2.msra.mxu0 0.0
      %399 = vmatprep.subr.mxu0 0.0
      %400 = vmatpush2.msra.mxu0 0.0
      %401 = vmatprep.subr.mxu0 0.0
      %402 = vmatpush2.msra.mxu0 0.0
      %403 = vmatprep.subr.mxu0 0.0
      %404 = vmatpush2.msra.mxu0 0.0
      %405 = vmatprep.subr.mxu0 0.0
      %406 = vmatpush2.msra.mxu0 0.0
      %407 = vmatprep.subr.mxu0 0.0
      %408 = vmatpush2.msra.mxu0 0.0
      %409 = vmatprep.subr.mxu0 0.0
      %410 = vmatpush2.msra.mxu0 0.0
      %411 = vmatprep.subr.mxu0 0.0
      %412 = vmatpush2.msra.mxu0 0.0
      %413 = vmatprep.subr.mxu0 0.0
      %414 = vmatpush2.msra.mxu0 0.0
      %415 = vmatprep.subr.mxu0 0.0
      %416 = vmatpush2.msra.mxu0 0.0
      %417 = vmatprep.subr.mxu0 0.0
      %418 = vmatpush2.msra.mxu0 0.0
      %419 = vmatprep.subr.mxu0 0.0
      %420 = vmatpush2.msra.mxu0 0.0
      %421 = vmatprep.mubr.f32.mxu0 0.0
      %422 = vmatmul.mubr.f32.gmra.mxu0 %v346
      %v423 = vpop.f32.mrf.mxu0
      %v424 = vadd.f32 0.0, %v423
      %v425 = vpop.f32.mrf.mxu0
      %426 = vmatprep.mubr.f32.mxu0 0.0
      %427 = vmatmul.mubr.f32.gmra.mxu0 %v349
      %v428 = vpop.f32.mrf.mxu0
      %v429 = vadd.f32 0.0, %v428
      %v430 = vpop.f32.mrf.mxu0
      %431 = vmatprep.mubr.f32.mxu0 0.0
      %432 = vmatmul.mubr.f32.gmra.mxu0 %v352
      %v433 = vpop.f32.mrf.mxu0
      %v434 = vadd.f32 0.0, %v433
      %v435 = vpop.f32.mrf.mxu0
      %436 = vmatprep.mubr.f32.mxu0 0.0
      %437 = vmatmul.mubr.f32.gmra.mxu0 %v355
      %v438 = vpop.f32.mrf.mxu0
      %v439 = vadd.f32 0.0, %v438
      %v440 = vpop.f32.mrf.mxu0
      %441 = vdwg.mxu0
      %v443 = vsel %vm238, %v424, 0
      %v446 = vsel %vm238, %v429, 0
      %v449 = vsel %vm238, %v434, 0
      %v452 = vsel %vm238, %v439, 0
      %454 = vmatprep.subr.mxu0 0.0
      %455 = vmatpush1.msra.mxu0 0.0
      %456 = vmatprep.subr.mxu0 0.0
      %457 = vmatpush1.msra.mxu0 0.0
      %458 = vmatprep.subr.mxu0 0.0
      %459 = vmatpush1.msra.mxu0 0.0
      %460 = vmatprep.subr.mxu0 0.0
      %461 = vmatpush1.msra.mxu0 0.0
      %462 = vmatprep.subr.mxu0 0.0
      %463 = vmatpush1.msra.mxu0 0.0
      %464 = vmatprep.subr.mxu0 0.0
      %465 = vmatpush1.msra.mxu0 0.0
      %466 = vmatprep.subr.mxu0 0.0
      %467 = vmatpush1.msra.mxu0 0.0
      %468 = vmatprep.subr.mxu0 0.0
      %469 = vmatpush1.msra.mxu0 0.0
      %470 = vmatprep.subr.mxu0 0.0
      %471 = vmatpush1.msra.mxu0 0.0
      %472 = vmatprep.subr.mxu0 0.0
      %473 = vmatpush1.msra.mxu0 0.0
      %474 = vmatprep.subr.mxu0 0.0
      %475 = vmatpush1.msra.mxu0 0.0
      %476 = vmatprep.subr.mxu0 0.0
      %477 = vmatpush1.msra.mxu0 0.0
      %478 = vmatprep.subr.mxu0 0.0
      %479 = vmatpush1.msra.mxu0 0.0
      %480 = vmatprep.subr.mxu0 0.0
      %481 = vmatpush1.msra.mxu0 0.0
      %482 = vmatprep.subr.mxu0 0.0
      %483 = vmatpush1.msra.mxu0 0.0
      %484 = vmatprep.subr.mxu0 0.0
      %485 = vmatpush1.msra.mxu0 %v188
      %486 = vmatprep.subr.mxu0 0.0
      %487 = vmatpush2.msra.mxu0 0.0
      %488 = vmatprep.subr.mxu0 0.0
      %489 = vmatpush2.msra.mxu0 0.0
      %490 = vmatprep.subr.mxu0 0.0
      %491 = vmatpush2.msra.mxu0 0.0
      %492 = vmatprep.subr.mxu0 0.0
      %493 = vmatpush2.msra.mxu0 0.0
      %494 = vmatprep.subr.mxu0 0.0
      %495 = vmatpush2.msra.mxu0 0.0
      %496 = vmatprep.subr.mxu0 0.0
      %497 = vmatpush2.msra.mxu0 0.0
      %498 = vmatprep.subr.mxu0 0.0
      %499 = vmatpush2.msra.mxu0 0.0
      %500 = vmatprep.subr.mxu0 0.0
      %501 = vmatpush2.msra.mxu0 0.0
      %502 = vmatprep.subr.mxu0 0.0
      %503 = vmatpush2.msra.mxu0 0.0
      %504 = vmatprep.subr.mxu0 0.0
      %505 = vmatpush2.msra.mxu0 0.0
      %506 = vmatprep.subr.mxu0 0.0
      %507 = vmatpush2.msra.mxu0 0.0
      %508 = vmatprep.subr.mxu0 0.0
      %509 = vmatpush2.msra.mxu0 0.0
      %510 = vmatprep.subr.mxu0 0.0
      %511 = vmatpush2.msra.mxu0 0.0
      %512 = vmatprep.subr.mxu0 0.0
      %513 = vmatpush2.msra.mxu0 0.0
      %514 = vmatprep.subr.mxu0 0.0
      %515 = vmatpush2.msra.mxu0 0.0
      %516 = vmatprep.subr.mxu0 0.0
      %517 = vmatpush2.msra.mxu0 0.0
      %518 = vmatprep.mubr.f32.mxu0 0.0
      %519 = vmatmul.mubr.f32.gmra.mxu0 %v443
      %v520 = vpop.f32.mrf.mxu0
      %v521 = vadd.f32 0.0, %v520
      %v522 = vpop.f32.mrf.mxu0
      %523 = vmatprep.mubr.f32.mxu0 0.0
      %524 = vmatmul.mubr.f32.gmra.mxu0 %v446
      %v525 = vpop.f32.mrf.mxu0
      %v526 = vadd.f32 0.0, %v525
      %v527 = vpop.f32.mrf.mxu0
      %528 = vmatprep.mubr.f32.mxu0 0.0
      %529 = vmatmul.mubr.f32.gmra.mxu0 %v449
      %v530 = vpop.f32.mrf.mxu0
      %v531 = vadd.f32 0.0, %v530
      %v532 = vpop.f32.mrf.mxu0
      %533 = vmatprep.mubr.f32.mxu0 0.0
      %534 = vmatmul.mubr.f32.gmra.mxu0 %v452
      %v535 = vpop.f32.mrf.mxu0
      %v536 = vadd.f32 0.0, %v535
      %v537 = vpop.f32.mrf.mxu0
      %538 = vdwg.mxu0
      %v539 = vadd.f32 %v340, %v521
      %v540 = vadd.f32 %v341, %v526
      %v541 = vadd.f32 %v342, %v531
      %v542 = vadd.f32 %v343, %v536
      %v544 = vsel %vm344, %v230, 0
      %v547 = vsel %vm344, %v231, 0
      %v550 = vsel %vm344, %v232, 0
      %v553 = vsel %vm344, %v233, 0
      %555 = vmatprep.subr.mxu0 0.0
      %556 = vmatpush1.msra.mxu0 0.0
      %557 = vmatprep.subr.mxu0 0.0
      %558 = vmatpush1.msra.mxu0 0.0
      %559 = vmatprep.subr.mxu0 0.0
      %560 = vmatpush1.msra.mxu0 0.0
      %561 = vmatprep.subr.mxu0 0.0
      %562 = vmatpush1.msra.mxu0 0.0
      %563 = vmatprep.subr.mxu0 0.0
      %564 = vmatpush1.msra.mxu0 0.0
      %565 = vmatprep.subr.mxu0 0.0
      %566 = vmatpush1.msra.mxu0 0.0
      %567 = vmatprep.subr.mxu0 0.0
      %568 = vmatpush1.msra.mxu0 0.0
      %569 = vmatprep.subr.mxu0 0.0
      %570 = vmatpush1.msra.mxu0 0.0
      %571 = vmatprep.subr.mxu0 0.0
      %572 = vmatpush1.msra.mxu0 0.0
      %573 = vmatprep.subr.mxu0 0.0
      %574 = vmatpush1.msra.mxu0 0.0
      %575 = vmatprep.subr.mxu0 0.0
      %576 = vmatpush1.msra.mxu0 0.0
      %577 = vmatprep.subr.mxu0 0.0
      %578 = vmatpush1.msra.mxu0 0.0
      %579 = vmatprep.subr.mxu0 0.0
      %580 = vmatpush1.msra.mxu0 %v237
      %581 = vmatprep.subr.mxu0 0.0
      %582 = vmatpush1.msra.mxu0 %v236
      %583 = vmatprep.subr.mxu0 0.0
      %584 = vmatpush1.msra.mxu0 %v235
      %585 = vmatprep.subr.mxu0 0.0
      %586 = vmatpush1.msra.mxu0 %v234
      %587 = vmatprep.subr.mxu0 0.0
      %588 = vmatpush2.msra.mxu0 0.0
      %589 = vmatprep.subr.mxu0 0.0
      %590 = vmatpush2.msra.mxu0 0.0
      %591 = vmatprep.subr.mxu0 0.0
      %592 = vmatpush2.msra.mxu0 0.0
      %593 = vmatprep.subr.mxu0 0.0
      %594 = vmatpush2.msra.mxu0 0.0
      %595 = vmatprep.subr.mxu0 0.0
      %596 = vmatpush2.msra.mxu0 0.0
      %597 = vmatprep.subr.mxu0 0.0
      %598 = vmatpush2.msra.mxu0 0.0
      %599 = vmatprep.subr.mxu0 0.0
      %600 = vmatpush2.msra.mxu0 0.0
      %601 = vmatprep.subr.mxu0 0.0
      %602 = vmatpush2.msra.mxu0 0.0
      %603 = vmatprep.subr.mxu0 0.0
      %604 = vmatpush2.msra.mxu0 0.0
      %605 = vmatprep.subr.mxu0 0.0
      %606 = vmatpush2.msra.mxu0 0.0
      %607 = vmatprep.subr.mxu0 0.0
      %608 = vmatpush2.msra.mxu0 0.0
      %609 = vmatprep.subr.mxu0 0.0
      %610 = vmatpush2.msra.mxu0 0.0
      %611 = vmatprep.subr.mxu0 0.0
      %612 = vmatpush2.msra.mxu0 0.0
      %613 = vmatprep.subr.mxu0 0.0
      %614 = vmatpush2.msra.mxu0 0.0
      %615 = vmatprep.subr.mxu0 0.0
      %616 = vmatpush2.msra.mxu0 0.0
      %617 = vmatprep.subr.mxu0 0.0
      %618 = vmatpush2.msra.mxu0 0.0
      %619 = vmatprep.mubr.f32.mxu0 0.0
      %620 = vmatmul.mubr.f32.gmra.mxu0 %v544
      %v621 = vpop.f32.mrf.mxu0
      %v622 = vadd.f32 0.0, %v621
      %v623 = vpop.f32.mrf.mxu0
      %624 = vmatprep.mubr.f32.mxu0 0.0
      %625 = vmatmul.mubr.f32.gmra.mxu0 %v547
      %v626 = vpop.f32.mrf.mxu0
      %v627 = vadd.f32 0.0, %v626
      %v628 = vpop.f32.mrf.mxu0
      %629 = vmatprep.mubr.f32.mxu0 0.0
      %630 = vmatmul.mubr.f32.gmra.mxu0 %v550
      %v631 = vpop.f32.mrf.mxu0
      %v632 = vadd.f32 0.0, %v631
      %v633 = vpop.f32.mrf.mxu0
      %634 = vmatprep.mubr.f32.mxu0 0.0
      %635 = vmatmul.mubr.f32.gmra.mxu0 %v553
      %v636 = vpop.f32.mrf.mxu0
      %v637 = vadd.f32 0.0, %v636
      %v638 = vpop.f32.mrf.mxu0
      %639 = vdwg.mxu0
      %v641 = vsel %vm238, %v622, 0
      %v644 = vsel %vm238, %v627, 0
      %v647 = vsel %vm238, %v632, 0
      %v650 = vsel %vm238, %v637, 0
      %652 = vmatprep.subr.mxu0 0.0
      %653 = vmatpush1.msra.mxu0 0.0
      %654 = vmatprep.subr.mxu0 0.0
      %655 = vmatpush1.msra.mxu0 0.0
      %656 = vmatprep.subr.mxu0 0.0
      %657 = vmatpush1.msra.mxu0 0.0
      %658 = vmatprep.subr.mxu0 0.0
      %659 = vmatpush1.msra.mxu0 0.0
      %660 = vmatprep.subr.mxu0 0.0
      %661 = vmatpush1.msra.mxu0 0.0
      %662 = vmatprep.subr.mxu0 0.0
      %663 = vmatpush1.msra.mxu0 0.0
      %664 = vmatprep.subr.mxu0 0.0
      %665 = vmatpush1.msra.mxu0 0.0
      %666 = vmatprep.subr.mxu0 0.0
      %667 = vmatpush1.msra.mxu0 0.0
      %668 = vmatprep.subr.mxu0 0.0
      %669 = vmatpush1.msra.mxu0 0.0
      %670 = vmatprep.subr.mxu0 0.0
      %671 = vmatpush1.msra.mxu0 0.0
      %672 = vmatprep.subr.mxu0 0.0
      %673 = vmatpush1.msra.mxu0 0.0
      %674 = vmatprep.subr.mxu0 0.0
      %675 = vmatpush1.msra.mxu0 0.0
      %676 = vmatprep.subr.mxu0 0.0
      %677 = vmatpush1.msra.mxu0 0.0
      %678 = vmatprep.subr.mxu0 0.0
      %679 = vmatpush1.msra.mxu0 0.0
      %680 = vmatprep.subr.mxu0 0.0
      %681 = vmatpush1.msra.mxu0 0.0
      %682 = vmatprep.subr.mxu0 0.0
      %683 = vmatpush1.msra.mxu0 %v189
      %684 = vmatprep.subr.mxu0 0.0
      %685 = vmatpush2.msra.mxu0 0.0
      %686 = vmatprep.subr.mxu0 0.0
      %687 = vmatpush2.msra.mxu0 0.0
      %688 = vmatprep.subr.mxu0 0.0
      %689 = vmatpush2.msra.mxu0 0.0
      %690 = vmatprep.subr.mxu0 0.0
      %691 = vmatpush2.msra.mxu0 0.0
      %692 = vmatprep.subr.mxu0 0.0
      %693 = vmatpush2.msra.mxu0 0.0
      %694 = vmatprep.subr.mxu0 0.0
      %695 = vmatpush2.msra.mxu0 0.0
      %696 = vmatprep.subr.mxu0 0.0
      %697 = vmatpush2.msra.mxu0 0.0
      %698 = vmatprep.subr.mxu0 0.0
      %699 = vmatpush2.msra.mxu0 0.0
      %700 = vmatprep.subr.mxu0 0.0
      %701 = vmatpush2.msra.mxu0 0.0
      %702 = vmatprep.subr.mxu0 0.0
      %703 = vmatpush2.msra.mxu0 0.0
      %704 = vmatprep.subr.mxu0 0.0
      %705 = vmatpush2.msra.mxu0 0.0
      %706 = vmatprep.subr.mxu0 0.0
      %707 = vmatpush2.msra.mxu0 0.0
      %708 = vmatprep.subr.mxu0 0.0
      %709 = vmatpush2.msra.mxu0 0.0
      %710 = vmatprep.subr.mxu0 0.0
      %711 = vmatpush2.msra.mxu0 0.0
      %712 = vmatprep.subr.mxu0 0.0
      %713 = vmatpush2.msra.mxu0 0.0
      %714 = vmatprep.subr.mxu0 0.0
      %715 = vmatpush2.msra.mxu0 0.0
      %716 = vmatprep.mubr.f32.mxu0 0.0
      %717 = vmatmul.mubr.f32.gmra.mxu0 %v641
      %v718 = vpop.f32.mrf.mxu0
      %v719 = vadd.f32 0.0, %v718
      %v720 = vpop.f32.mrf.mxu0
      %721 = vmatprep.mubr.f32.mxu0 0.0
      %722 = vmatmul.mubr.f32.gmra.mxu0 %v644
      %v723 = vpop.f32.mrf.mxu0
      %v724 = vadd.f32 0.0, %v723
      %v725 = vpop.f32.mrf.mxu0
      %726 = vmatprep.mubr.f32.mxu0 0.0
      %727 = vmatmul.mubr.f32.gmra.mxu0 %v647
      %v728 = vpop.f32.mrf.mxu0
      %v729 = vadd.f32 0.0, %v728
      %v730 = vpop.f32.mrf.mxu0
      %731 = vmatprep.mubr.f32.mxu0 0.0
      %732 = vmatmul.mubr.f32.gmra.mxu0 %v650
      %v733 = vpop.f32.mrf.mxu0
      %v734 = vadd.f32 0.0, %v733
      %v735 = vpop.f32.mrf.mxu0
      %736 = vdwg.mxu0
      %v737 = vadd.f32 %v539, %v719
      %v738 = vadd.f32 %v540, %v724
      %v739 = vadd.f32 %v541, %v729
      %v740 = vadd.f32 %v542, %v734
      %v741 = vmax.f32 %v737, 0.0
      %v742 = vmax.f32 %v738, 0.0
      %v743 = vmax.f32 %v739, 0.0
      %v744 = vmax.f32 %v740, 0.0
      %745 = vmatprep.subr.mxu0 0.0
      %746 = vmatpush1.msra.mxu0 0.0
      %747 = vmatprep.subr.mxu0 0.0
      %748 = vmatpush1.msra.mxu0 0.0
      %749 = vmatprep.subr.mxu0 0.0
      %750 = vmatpush1.msra.mxu0 0.0
      %751 = vmatprep.subr.mxu0 0.0
      %752 = vmatpush1.msra.mxu0 0.0
      %753 = vmatprep.subr.mxu0 0.0
      %754 = vmatpush1.msra.mxu0 0.0
      %755 = vmatprep.subr.mxu0 0.0
      %756 = vmatpush1.msra.mxu0 0.0
      %757 = vmatprep.subr.mxu0 0.0
      %758 = vmatpush1.msra.mxu0 0.0
      %759 = vmatprep.subr.mxu0 0.0
      %760 = vmatpush1.msra.mxu0 0.0
      %761 = vmatprep.subr.mxu0 0.0
      %762 = vmatpush1.msra.mxu0 0.0
      %763 = vmatprep.subr.mxu0 0.0
      %764 = vmatpush1.msra.mxu0 0.0
      %765 = vmatprep.subr.mxu0 0.0
      %766 = vmatpush1.msra.mxu0 0.0
      %767 = vmatprep.subr.mxu0 0.0
      %768 = vmatpush1.msra.mxu0 0.0
      %769 = vmatprep.subr.mxu0 0.0
      %770 = vmatpush1.msra.mxu0 %v744
      %771 = vmatprep.subr.mxu0 0.0
      %772 = vmatpush1.msra.mxu0 %v743
      %773 = vmatprep.subr.mxu0 0.0
      %774 = vmatpush1.msra.mxu0 %v742
      %775 = vmatprep.subr.mxu0 0.0
      %776 = vmatpush1.msra.mxu0 %v741
      %777 = vmatprep.subr.mxu0 0.0
      %778 = vmatpush2.msra.mxu0 0.0
      %779 = vmatprep.subr.mxu0 0.0
      %780 = vmatpush2.msra.mxu0 0.0
      %781 = vmatprep.subr.mxu0 0.0
      %782 = vmatpush2.msra.mxu0 0.0
      %783 = vmatprep.subr.mxu0 0.0
      %784 = vmatpush2.msra.mxu0 0.0
      %785 = vmatprep.subr.mxu0 0.0
      %786 = vmatpush2.msra.mxu0 0.0
      %787 = vmatprep.subr.mxu0 0.0
      %788 = vmatpush2.msra.mxu0 0.0
      %789 = vmatprep.subr.mxu0 0.0
      %790 = vmatpush2.msra.mxu0 0.0
      %791 = vmatprep.subr.mxu0 0.0
      %792 = vmatpush2.msra.mxu0 0.0
      %793 = vmatprep.subr.mxu0 0.0
      %794 = vmatpush2.msra.mxu0 0.0
      %795 = vmatprep.subr.mxu0 0.0
      %796 = vmatpush2.msra.mxu0 0.0
      %797 = vmatprep.subr.mxu0 0.0
      %798 = vmatpush2.msra.mxu0 0.0
      %799 = vmatprep.subr.mxu0 0.0
      %800 = vmatpush2.msra.mxu0 0.0
      %801 = vmatprep.subr.mxu0 0.0
      %802 = vmatpush2.msra.mxu0 0.0
      %803 = vmatprep.subr.mxu0 0.0
      %804 = vmatpush2.msra.mxu0 0.0
      %805 = vmatprep.subr.mxu0 0.0
      %806 = vmatpush2.msra.mxu0 0.0
      %807 = vmatprep.subr.mxu0 0.0
      %808 = vmatpush2.msra.mxu0 0.0
      %809 = vmatprep.mubr.f32.mxu0 0.0
      %810 = vmatmul.mubr.f32.gmra.mxu0 %v346
      %v811 = vpop.f32.mrf.mxu0
      %v812 = vadd.f32 0.0, %v811
      %v813 = vpop.f32.mrf.mxu0
      %814 = vmatprep.mubr.f32.mxu0 0.0
      %815 = vmatmul.mubr.f32.gmra.mxu0 %v349
      %v816 = vpop.f32.mrf.mxu0
      %v817 = vadd.f32 0.0, %v816
      %v818 = vpop.f32.mrf.mxu0
      %819 = vmatprep.mubr.f32.mxu0 0.0
      %820 = vmatmul.mubr.f32.gmra.mxu0 %v352
      %v821 = vpop.f32.mrf.mxu0
      %v822 = vadd.f32 0.0, %v821
      %v823 = vpop.f32.mrf.mxu0
      %824 = vmatprep.mubr.f32.mxu0 0.0
      %825 = vmatmul.mubr.f32.gmra.mxu0 %v355
      %v826 = vpop.f32.mrf.mxu0
      %v827 = vadd.f32 0.0, %v826
      %v828 = vpop.f32.mrf.mxu0
      %829 = vdwg.mxu0
      %v830 = vmax.f32 %v741, %v812
      %v831 = vmax.f32 %v742, %v817
      %v832 = vmax.f32 %v743, %v822
      %v833 = vmax.f32 %v744, %v827
      %834 = vmatprep.subr.mxu0 0.0
      %835 = vmatpush1.msra.mxu0 0.0
      %836 = vmatprep.subr.mxu0 0.0
      %837 = vmatpush1.msra.mxu0 0.0
      %838 = vmatprep.subr.mxu0 0.0
      %839 = vmatpush1.msra.mxu0 0.0
      %840 = vmatprep.subr.mxu0 0.0
      %841 = vmatpush1.msra.mxu0 0.0
      %842 = vmatprep.subr.mxu0 0.0
      %843 = vmatpush1.msra.mxu0 0.0
      %844 = vmatprep.subr.mxu0 0.0
      %845 = vmatpush1.msra.mxu0 0.0
      %846 = vmatprep.subr.mxu0 0.0
      %847 = vmatpush1.msra.mxu0 0.0
      %848 = vmatprep.subr.mxu0 0.0
      %849 = vmatpush1.msra.mxu0 0.0
      %850 = vmatprep.subr.mxu0 0.0
      %851 = vmatpush1.msra.mxu0 0.0
      %852 = vmatprep.subr.mxu0 0.0
      %853 = vmatpush1.msra.mxu0 0.0
      %854 = vmatprep.subr.mxu0 0.0
      %855 = vmatpush1.msra.mxu0 0.0
      %856 = vmatprep.subr.mxu0 0.0
      %857 = vmatpush1.msra.mxu0 0.0
      %858 = vmatprep.subr.mxu0 0.0
      %859 = vmatpush1.msra.mxu0 %v744
      %860 = vmatprep.subr.mxu0 0.0
      %861 = vmatpush1.msra.mxu0 %v743
      %862 = vmatprep.subr.mxu0 0.0
      %863 = vmatpush1.msra.mxu0 %v742
      %864 = vmatprep.subr.mxu0 0.0
      %865 = vmatpush1.msra.mxu0 %v741
      %866 = vmatprep.subr.mxu0 0.0
      %867 = vmatpush2.msra.mxu0 0.0
      %868 = vmatprep.subr.mxu0 0.0
      %869 = vmatpush2.msra.mxu0 0.0
      %870 = vmatprep.subr.mxu0 0.0
      %871 = vmatpush2.msra.mxu0 0.0
      %872 = vmatprep.subr.mxu0 0.0
      %873 = vmatpush2.msra.mxu0 0.0
      %874 = vmatprep.subr.mxu0 0.0
      %875 = vmatpush2.msra.mxu0 0.0
      %876 = vmatprep.subr.mxu0 0.0
      %877 = vmatpush2.msra.mxu0 0.0
      %878 = vmatprep.subr.mxu0 0.0
      %879 = vmatpush2.msra.mxu0 0.0
      %880 = vmatprep.subr.mxu0 0.0
      %881 = vmatpush2.msra.mxu0 0.0
      %882 = vmatprep.subr.mxu0 0.0
      %883 = vmatpush2.msra.mxu0 0.0
      %884 = vmatprep.subr.mxu0 0.0
      %885 = vmatpush2.msra.mxu0 0.0
      %886 = vmatprep.subr.mxu0 0.0
      %887 = vmatpush2.msra.mxu0 0.0
      %888 = vmatprep.subr.mxu0 0.0
      %889 = vmatpush2.msra.mxu0 0.0
      %890 = vmatprep.subr.mxu0 0.0
      %891 = vmatpush2.msra.mxu0 0.0
      %892 = vmatprep.subr.mxu0 0.0
      %893 = vmatpush2.msra.mxu0 0.0
      %894 = vmatprep.subr.mxu0 0.0
      %895 = vmatpush2.msra.mxu0 0.0
      %896 = vmatprep.subr.mxu0 0.0
      %897 = vmatpush2.msra.mxu0 0.0
      %898 = vmatprep.mubr.f32.mxu0 0.0
      %899 = vmatmul.mubr.f32.gmra.mxu0 %v544
      %v900 = vpop.f32.mrf.mxu0
      %v901 = vadd.f32 0.0, %v900
      %v902 = vpop.f32.mrf.mxu0
      %903 = vmatprep.mubr.f32.mxu0 0.0
      %904 = vmatmul.mubr.f32.gmra.mxu0 %v547
      %v905 = vpop.f32.mrf.mxu0
      %v906 = vadd.f32 0.0, %v905
      %v907 = vpop.f32.mrf.mxu0
      %908 = vmatprep.mubr.f32.mxu0 0.0
      %909 = vmatmul.mubr.f32.gmra.mxu0 %v550
      %v910 = vpop.f32.mrf.mxu0
      %v911 = vadd.f32 0.0, %v910
      %v912 = vpop.f32.mrf.mxu0
      %913 = vmatprep.mubr.f32.mxu0 0.0
      %914 = vmatmul.mubr.f32.gmra.mxu0 %v553
      %v915 = vpop.f32.mrf.mxu0
      %v916 = vadd.f32 0.0, %v915
      %v917 = vpop.f32.mrf.mxu0
      %918 = vdwg.mxu0
      %v919 = vmax.f32 %v830, %v901
      %v920 = vmax.f32 %v831, %v906
      %v921 = vmax.f32 %v832, %v911
      %v922 = vmax.f32 %v833, %v916
      %v923 = vmul.f32 %v919, %v177
      %v924 = vmul.f32 %v920, %v178
      %v925 = vmul.f32 %v921, %v179
      %v926 = vmul.f32 %v922, %v180
      %vm927 = vcmask 162816
      %v929 = vsel %vm927, %v923, 0
      %v932 = vsel %vm927, %v924, 0
      %v935 = vsel %vm927, %v925, 0
      %v938 = vsel %vm927, %v926, 0
      %vm940 = vcmask 1043456
      %v942 = vsel %vm940, %v193, 0
      %944 = vmatprep.subr.mxu0 0.0
      %945 = vmatpush1.msra.mxu0 0.0
      %946 = vmatprep.subr.mxu0 0.0
      %947 = vmatpush1.msra.mxu0 0.0
      %948 = vmatprep.subr.mxu0 0.0
      %949 = vmatpush1.msra.mxu0 0.0
      %950 = vmatprep.subr.mxu0 0.0
      %951 = vmatpush1.msra.mxu0 0.0
      %952 = vmatprep.subr.mxu0 0.0
      %953 = vmatpush1.msra.mxu0 0.0
      %954 = vmatprep.subr.mxu0 0.0
      %955 = vmatpush1.msra.mxu0 0.0
      %956 = vmatprep.subr.mxu0 0.0
      %957 = vmatpush1.msra.mxu0 0.0
      %958 = vmatprep.subr.mxu0 0.0
      %959 = vmatpush1.msra.mxu0 0.0
      %960 = vmatprep.subr.mxu0 0.0
      %961 = vmatpush1.msra.mxu0 0.0
      %962 = vmatprep.subr.mxu0 0.0
      %963 = vmatpush1.msra.mxu0 0.0
      %964 = vmatprep.subr.mxu0 0.0
      %965 = vmatpush1.msra.mxu0 0.0
      %966 = vmatprep.subr.mxu0 0.0
      %967 = vmatpush1.msra.mxu0 0.0
      %968 = vmatprep.subr.mxu0 0.0
      %969 = vmatpush1.msra.mxu0 0.0
      %970 = vmatprep.subr.mxu0 0.0
      %971 = vmatpush1.msra.mxu0 %v942
      %972 = vmatprep.subr.mxu0 0.0
      %973 = vmatpush1.msra.mxu0 %v192
      %974 = vmatprep.subr.mxu0 0.0
      %975 = vmatpush1.msra.mxu0 %v191
      %976 = vmatprep.subr.mxu0 0.0
      %977 = vmatpush2.msra.mxu0 0.0
      %978 = vmatprep.subr.mxu0 0.0
      %979 = vmatpush2.msra.mxu0 0.0
      %980 = vmatprep.subr.mxu0 0.0
      %981 = vmatpush2.msra.mxu0 0.0
      %982 = vmatprep.subr.mxu0 0.0
      %983 = vmatpush2.msra.mxu0 0.0
      %984 = vmatprep.subr.mxu0 0.0
      %985 = vmatpush2.msra.mxu0 0.0
      %986 = vmatprep.subr.mxu0 0.0
      %987 = vmatpush2.msra.mxu0 0.0
      %988 = vmatprep.subr.mxu0 0.0
      %989 = vmatpush2.msra.mxu0 0.0
      %990 = vmatprep.subr.mxu0 0.0
      %991 = vmatpush2.msra.mxu0 0.0
      %992 = vmatprep.subr.mxu0 0.0
      %993 = vmatpush2.msra.mxu0 0.0
      %994 = vmatprep.subr.mxu0 0.0
      %995 = vmatpush2.msra.mxu0 0.0
      %996 = vmatprep.subr.mxu0 0.0
      %997 = vmatpush2.msra.mxu0 0.0
      %998 = vmatprep.subr.mxu0 0.0
      %999 = vmatpush2.msra.mxu0 0.0
      %1000 = vmatprep.subr.mxu0 0.0
      %1001 = vmatpush2.msra.mxu0 0.0
      %1002 = vmatprep.subr.mxu0 0.0
      %1003 = vmatpush2.msra.mxu0 0.0
      %1004 = vmatprep.subr.mxu0 0.0
      %1005 = vmatpush2.msra.mxu0 0.0
      %1006 = vmatprep.subr.mxu0 0.0
      %1007 = vmatpush2.msra.mxu0 0.0
      %1008 = vmatprep.mubr.f32.mxu0 0.0
      %1009 = vmatmul.mubr.f32.gmra.mxu0 %v929
      %v1010 = vpop.f32.mrf.mxu0
      %v1011 = vadd.f32 0.0, %v1010
      %v1012 = vpop.f32.mrf.mxu0
      %1013 = vmatprep.mubr.f32.mxu0 0.0
      %1014 = vmatmul.mubr.f32.gmra.mxu0 %v932
      %v1015 = vpop.f32.mrf.mxu0
      %v1016 = vadd.f32 0.0, %v1015
      %v1017 = vpop.f32.mrf.mxu0
      %1018 = vmatprep.mubr.f32.mxu0 0.0
      %1019 = vmatmul.mubr.f32.gmra.mxu0 %v935
      %v1020 = vpop.f32.mrf.mxu0
      %v1021 = vadd.f32 0.0, %v1020
      %v1022 = vpop.f32.mrf.mxu0
      %1023 = vmatprep.mubr.f32.mxu0 0.0
      %1024 = vmatmul.mubr.f32.gmra.mxu0 %v938
      %v1025 = vpop.f32.mrf.mxu0
      %v1026 = vadd.f32 0.0, %v1025
      %v1027 = vpop.f32.mrf.mxu0
      %1028 = vdwg.mxu0
      %v1029 = vlaneseq
      %v1030 = vshrl.u32 %v1029, 7
      %v1031 = vsub.s32 0, %v1030
      %v1032 = vrot.slane %v200, %v1031
      %v1033 = vadd.f32 %v1032, %v1011
      %v1034 = vadd.f32 %v1032, %v1016
      %v1035 = vadd.f32 %v1032, %v1021
      %v1036 = vadd.f32 %v1032, %v1026
      %1037 = vmatprep.subr.mxu0 0.0
      %1038 = vmatpush1.msra.mxu0 0.0
      %1039 = vmatprep.subr.mxu0 0.0
      %1040 = vmatpush1.msra.mxu0 0.0
      %1041 = vmatprep.subr.mxu0 0.0
      %1042 = vmatpush1.msra.mxu0 0.0
      %1043 = vmatprep.subr.mxu0 0.0
      %1044 = vmatpush1.msra.mxu0 0.0
      %1045 = vmatprep.subr.mxu0 0.0
      %1046 = vmatpush1.msra.mxu0 0.0
      %1047 = vmatprep.subr.mxu0 0.0
      %1048 = vmatpush1.msra.mxu0 0.0
      %1049 = vmatprep.subr.mxu0 0.0
      %1050 = vmatpush1.msra.mxu0 0.0
      %1051 = vmatprep.subr.mxu0 0.0
      %1052 = vmatpush1.msra.mxu0 0.0
      %1053 = vmatprep.subr.mxu0 0.0
      %1054 = vmatpush1.msra.mxu0 0.0
      %1055 = vmatprep.subr.mxu0 0.0
      %1056 = vmatpush1.msra.mxu0 0.0
      %1057 = vmatprep.subr.mxu0 0.0
      %1058 = vmatpush1.msra.mxu0 0.0
      %1059 = vmatprep.subr.mxu0 0.0
      %1060 = vmatpush1.msra.mxu0 0.0
      %1061 = vmatprep.subr.mxu0 0.0
      %1062 = vmatpush1.msra.mxu0 %v926
      %1063 = vmatprep.subr.mxu0 0.0
      %1064 = vmatpush1.msra.mxu0 %v925
      %1065 = vmatprep.subr.mxu0 0.0
      %1066 = vmatpush1.msra.mxu0 %v924
      %1067 = vmatprep.subr.mxu0 0.0
      %1068 = vmatpush1.msra.mxu0 %v923
      %1069 = vmatprep.subr.mxu0 0.0
      %1070 = vmatpush2.msra.mxu0 0.0
      %1071 = vmatprep.subr.mxu0 0.0
      %1072 = vmatpush2.msra.mxu0 0.0
      %1073 = vmatprep.subr.mxu0 0.0
      %1074 = vmatpush2.msra.mxu0 0.0
      %1075 = vmatprep.subr.mxu0 0.0
      %1076 = vmatpush2.msra.mxu0 0.0
      %1077 = vmatprep.subr.mxu0 0.0
      %1078 = vmatpush2.msra.mxu0 0.0
      %1079 = vmatprep.subr.mxu0 0.0
      %1080 = vmatpush2.msra.mxu0 0.0
      %1081 = vmatprep.subr.mxu0 0.0
      %1082 = vmatpush2.msra.mxu0 0.0
      %1083 = vmatprep.subr.mxu0 0.0
      %1084 = vmatpush2.msra.mxu0 0.0
      %1085 = vmatprep.subr.mxu0 0.0
      %1086 = vmatpush2.msra.mxu0 0.0
      %1087 = vmatprep.subr.mxu0 0.0
      %1088 = vmatpush2.msra.mxu0 0.0
      %1089 = vmatprep.subr.mxu0 0.0
      %1090 = vmatpush2.msra.mxu0 0.0
      %1091 = vmatprep.subr.mxu0 0.0
      %1092 = vmatpush2.msra.mxu0 0.0
      %1093 = vmatprep.subr.mxu0 0.0
      %1094 = vmatpush2.msra.mxu0 0.0
      %1095 = vmatprep.subr.mxu0 0.0
      %1096 = vmatpush2.msra.mxu0 0.0
      %1097 = vmatprep.subr.mxu0 0.0
      %1098 = vmatpush2.msra.mxu0 0.0
      %1099 = vmatprep.subr.mxu0 0.0
      %1100 = vmatpush2.msra.mxu0 0.0
      %1101 = vmatprep.mubr.f32.mxu0 0.0
      %1102 = vmatmul.mubr.f32.gmra.mxu0 %v346
      %v1103 = vpop.f32.mrf.mxu0
      %v1104 = vadd.f32 0.0, %v1103
      %v1105 = vpop.f32.mrf.mxu0
      %1106 = vmatprep.mubr.f32.mxu0 0.0
      %1107 = vmatmul.mubr.f32.gmra.mxu0 %v349
      %v1108 = vpop.f32.mrf.mxu0
      %v1109 = vadd.f32 0.0, %v1108
      %v1110 = vpop.f32.mrf.mxu0
      %1111 = vmatprep.mubr.f32.mxu0 0.0
      %1112 = vmatmul.mubr.f32.gmra.mxu0 %v352
      %v1113 = vpop.f32.mrf.mxu0
      %v1114 = vadd.f32 0.0, %v1113
      %v1115 = vpop.f32.mrf.mxu0
      %1116 = vmatprep.mubr.f32.mxu0 0.0
      %1117 = vmatmul.mubr.f32.gmra.mxu0 %v355
      %v1118 = vpop.f32.mrf.mxu0
      %v1119 = vadd.f32 0.0, %v1118
      %v1120 = vpop.f32.mrf.mxu0
      %1121 = vdwg.mxu0
      %v1123 = vsel %vm927, %v1104, 0
      %v1126 = vsel %vm927, %v1109, 0
      %v1129 = vsel %vm927, %v1114, 0
      %v1132 = vsel %vm927, %v1119, 0
      %v1135 = vsel %vm940, %v196, 0
      %1137 = vmatprep.subr.mxu0 0.0
      %1138 = vmatpush1.msra.mxu0 0.0
      %1139 = vmatprep.subr.mxu0 0.0
      %1140 = vmatpush1.msra.mxu0 0.0
      %1141 = vmatprep.subr.mxu0 0.0
      %1142 = vmatpush1.msra.mxu0 0.0
      %1143 = vmatprep.subr.mxu0 0.0
      %1144 = vmatpush1.msra.mxu0 0.0
      %1145 = vmatprep.subr.mxu0 0.0
      %1146 = vmatpush1.msra.mxu0 0.0
      %1147 = vmatprep.subr.mxu0 0.0
      %1148 = vmatpush1.msra.mxu0 0.0
      %1149 = vmatprep.subr.mxu0 0.0
      %1150 = vmatpush1.msra.mxu0 0.0
      %1151 = vmatprep.subr.mxu0 0.0
      %1152 = vmatpush1.msra.mxu0 0.0
      %1153 = vmatprep.subr.mxu0 0.0
      %1154 = vmatpush1.msra.mxu0 0.0
      %1155 = vmatprep.subr.mxu0 0.0
      %1156 = vmatpush1.msra.mxu0 0.0
      %1157 = vmatprep.subr.mxu0 0.0
      %1158 = vmatpush1.msra.mxu0 0.0
      %1159 = vmatprep.subr.mxu0 0.0
      %1160 = vmatpush1.msra.mxu0 0.0
      %1161 = vmatprep.subr.mxu0 0.0
      %1162 = vmatpush1.msra.mxu0 0.0
      %1163 = vmatprep.subr.mxu0 0.0
      %1164 = vmatpush1.msra.mxu0 %v1135
      %1165 = vmatprep.subr.mxu0 0.0
      %1166 = vmatpush1.msra.mxu0 %v195
      %1167 = vmatprep.subr.mxu0 0.0
      %1168 = vmatpush1.msra.mxu0 %v194
      %1169 = vmatprep.subr.mxu0 0.0
      %1170 = vmatpush2.msra.mxu0 0.0
      %1171 = vmatprep.subr.mxu0 0.0
      %1172 = vmatpush2.msra.mxu0 0.0
      %1173 = vmatprep.subr.mxu0 0.0
      %1174 = vmatpush2.msra.mxu0 0.0
      %1175 = vmatprep.subr.mxu0 0.0
      %1176 = vmatpush2.msra.mxu0 0.0
      %1177 = vmatprep.subr.mxu0 0.0
      %1178 = vmatpush2.msra.mxu0 0.0
      %1179 = vmatprep.subr.mxu0 0.0
      %1180 = vmatpush2.msra.mxu0 0.0
      %1181 = vmatprep.subr.mxu0 0.0
      %1182 = vmatpush2.msra.mxu0 0.0
      %1183 = vmatprep.subr.mxu0 0.0
      %1184 = vmatpush2.msra.mxu0 0.0
      %1185 = vmatprep.subr.mxu0 0.0
      %1186 = vmatpush2.msra.mxu0 0.0
      %1187 = vmatprep.subr.mxu0 0.0
      %1188 = vmatpush2.msra.mxu0 0.0
      %1189 = vmatprep.subr.mxu0 0.0
      %1190 = vmatpush2.msra.mxu0 0.0
      %1191 = vmatprep.subr.mxu0 0.0
      %1192 = vmatpush2.msra.mxu0 0.0
      %1193 = vmatprep.subr.mxu0 0.0
      %1194 = vmatpush2.msra.mxu0 0.0
      %1195 = vmatprep.subr.mxu0 0.0
      %1196 = vmatpush2.msra.mxu0 0.0
      %1197 = vmatprep.subr.mxu0 0.0
      %1198 = vmatpush2.msra.mxu0 0.0
      %1199 = vmatprep.subr.mxu0 0.0
      %1200 = vmatpush2.msra.mxu0 0.0
      %1201 = vmatprep.mubr.f32.mxu0 0.0
      %1202 = vmatmul.mubr.f32.gmra.mxu0 %v1123
      %v1203 = vpop.f32.mrf.mxu0
      %v1204 = vadd.f32 0.0, %v1203
      %v1205 = vpop.f32.mrf.mxu0
      %1206 = vmatprep.mubr.f32.mxu0 0.0
      %1207 = vmatmul.mubr.f32.gmra.mxu0 %v1126
      %v1208 = vpop.f32.mrf.mxu0
      %v1209 = vadd.f32 0.0, %v1208
      %v1210 = vpop.f32.mrf.mxu0
      %1211 = vmatprep.mubr.f32.mxu0 0.0
      %1212 = vmatmul.mubr.f32.gmra.mxu0 %v1129
      %v1213 = vpop.f32.mrf.mxu0
      %v1214 = vadd.f32 0.0, %v1213
      %v1215 = vpop.f32.mrf.mxu0
      %1216 = vmatprep.mubr.f32.mxu0 0.0
      %1217 = vmatmul.mubr.f32.gmra.mxu0 %v1132
      %v1218 = vpop.f32.mrf.mxu0
      %v1219 = vadd.f32 0.0, %v1218
      %v1220 = vpop.f32.mrf.mxu0
      %1221 = vdwg.mxu0
      %v1222 = vadd.f32 %v1033, %v1204
      %v1223 = vadd.f32 %v1034, %v1209
      %v1224 = vadd.f32 %v1035, %v1214
      %v1225 = vadd.f32 %v1036, %v1219
      %1226 = vmatprep.subr.mxu0 0.0
      %1227 = vmatpush1.msra.mxu0 0.0
      %1228 = vmatprep.subr.mxu0 0.0
      %1229 = vmatpush1.msra.mxu0 0.0
      %1230 = vmatprep.subr.mxu0 0.0
      %1231 = vmatpush1.msra.mxu0 0.0
      %1232 = vmatprep.subr.mxu0 0.0
      %1233 = vmatpush1.msra.mxu0 0.0
      %1234 = vmatprep.subr.mxu0 0.0
      %1235 = vmatpush1.msra.mxu0 0.0
      %1236 = vmatprep.subr.mxu0 0.0
      %1237 = vmatpush1.msra.mxu0 0.0
      %1238 = vmatprep.subr.mxu0 0.0
      %1239 = vmatpush1.msra.mxu0 0.0
      %1240 = vmatprep.subr.mxu0 0.0
      %1241 = vmatpush1.msra.mxu0 0.0
      %1242 = vmatprep.subr.mxu0 0.0
      %1243 = vmatpush1.msra.mxu0 0.0
      %1244 = vmatprep.subr.mxu0 0.0
      %1245 = vmatpush1.msra.mxu0 0.0
      %1246 = vmatprep.subr.mxu0 0.0
      %1247 = vmatpush1.msra.mxu0 0.0
      %1248 = vmatprep.subr.mxu0 0.0
      %1249 = vmatpush1.msra.mxu0 0.0
      %1250 = vmatprep.subr.mxu0 0.0
      %1251 = vmatpush1.msra.mxu0 %v926
      %1252 = vmatprep.subr.mxu0 0.0
      %1253 = vmatpush1.msra.mxu0 %v925
      %1254 = vmatprep.subr.mxu0 0.0
      %1255 = vmatpush1.msra.mxu0 %v924
      %1256 = vmatprep.subr.mxu0 0.0
      %1257 = vmatpush1.msra.mxu0 %v923
      %1258 = vmatprep.subr.mxu0 0.0
      %1259 = vmatpush2.msra.mxu0 0.0
      %1260 = vmatprep.subr.mxu0 0.0
      %1261 = vmatpush2.msra.mxu0 0.0
      %1262 = vmatprep.subr.mxu0 0.0
      %1263 = vmatpush2.msra.mxu0 0.0
      %1264 = vmatprep.subr.mxu0 0.0
      %1265 = vmatpush2.msra.mxu0 0.0
      %1266 = vmatprep.subr.mxu0 0.0
      %1267 = vmatpush2.msra.mxu0 0.0
      %1268 = vmatprep.subr.mxu0 0.0
      %1269 = vmatpush2.msra.mxu0 0.0
      %1270 = vmatprep.subr.mxu0 0.0
      %1271 = vmatpush2.msra.mxu0 0.0
      %1272 = vmatprep.subr.mxu0 0.0
      %1273 = vmatpush2.msra.mxu0 0.0
      %1274 = vmatprep.subr.mxu0 0.0
      %1275 = vmatpush2.msra.mxu0 0.0
      %1276 = vmatprep.subr.mxu0 0.0
      %1277 = vmatpush2.msra.mxu0 0.0
      %1278 = vmatprep.subr.mxu0 0.0
      %1279 = vmatpush2.msra.mxu0 0.0
      %1280 = vmatprep.subr.mxu0 0.0
      %1281 = vmatpush2.msra.mxu0 0.0
      %1282 = vmatprep.subr.mxu0 0.0
      %1283 = vmatpush2.msra.mxu0 0.0
      %1284 = vmatprep.subr.mxu0 0.0
      %1285 = vmatpush2.msra.mxu0 0.0
      %1286 = vmatprep.subr.mxu0 0.0
      %1287 = vmatpush2.msra.mxu0 0.0
      %1288 = vmatprep.subr.mxu0 0.0
      %1289 = vmatpush2.msra.mxu0 0.0
      %1290 = vmatprep.mubr.f32.mxu0 0.0
      %1291 = vmatmul.mubr.f32.gmra.mxu0 %v544
      %v1292 = vpop.f32.mrf.mxu0
      %v1293 = vadd.f32 0.0, %v1292
      %v1294 = vpop.f32.mrf.mxu0
      %1295 = vmatprep.mubr.f32.mxu0 0.0
      %1296 = vmatmul.mubr.f32.gmra.mxu0 %v547
      %v1297 = vpop.f32.mrf.mxu0
      %v1298 = vadd.f32 0.0, %v1297
      %v1299 = vpop.f32.mrf.mxu0
      %1300 = vmatprep.mubr.f32.mxu0 0.0
      %1301 = vmatmul.mubr.f32.gmra.mxu0 %v550
      %v1302 = vpop.f32.mrf.mxu0
      %v1303 = vadd.f32 0.0, %v1302
      %v1304 = vpop.f32.mrf.mxu0
      %1305 = vmatprep.mubr.f32.mxu0 0.0
      %1306 = vmatmul.mubr.f32.gmra.mxu0 %v553
      %v1307 = vpop.f32.mrf.mxu0
      %v1308 = vadd.f32 0.0, %v1307
      %v1309 = vpop.f32.mrf.mxu0
      %1310 = vdwg.mxu0
      %v1312 = vsel %vm927, %v1293, 0
      %v1315 = vsel %vm927, %v1298, 0
      %v1318 = vsel %vm927, %v1303, 0
      %v1321 = vsel %vm927, %v1308, 0
      %v1324 = vsel %vm940, %v199, 0
      %1326 = vmatprep.subr.mxu0 0.0
      %1327 = vmatpush1.msra.mxu0 0.0
      %1328 = vmatprep.subr.mxu0 0.0
      %1329 = vmatpush1.msra.mxu0 0.0
      %1330 = vmatprep.subr.mxu0 0.0
      %1331 = vmatpush1.msra.mxu0 0.0
      %1332 = vmatprep.subr.mxu0 0.0
      %1333 = vmatpush1.msra.mxu0 0.0
      %1334 = vmatprep.subr.mxu0 0.0
      %1335 = vmatpush1.msra.mxu0 0.0
      %1336 = vmatprep.subr.mxu0 0.0
      %1337 = vmatpush1.msra.mxu0 0.0
      %1338 = vmatprep.subr.mxu0 0.0
      %1339 = vmatpush1.msra.mxu0 0.0
      %1340 = vmatprep.subr.mxu0 0.0
      %1341 = vmatpush1.msra.mxu0 0.0
      %1342 = vmatprep.subr.mxu0 0.0
      %1343 = vmatpush1.msra.mxu0 0.0
      %1344 = vmatprep.subr.mxu0 0.0
      %1345 = vmatpush1.msra.mxu0 0.0
      %1346 = vmatprep.subr.mxu0 0.0
      %1347 = vmatpush1.msra.mxu0 0.0
      %1348 = vmatprep.subr.mxu0 0.0
      %1349 = vmatpush1.msra.mxu0 0.0
      %1350 = vmatprep.subr.mxu0 0.0
      %1351 = vmatpush1.msra.mxu0 0.0
      %1352 = vmatprep.subr.mxu0 0.0
      %1353 = vmatpush1.msra.mxu0 %v1324
      %1354 = vmatprep.subr.mxu0 0.0
      %1355 = vmatpush1.msra.mxu0 %v198
      %1356 = vmatprep.subr.mxu0 0.0
      %1357 = vmatpush1.msra.mxu0 %v197
      %1358 = vmatprep.subr.mxu0 0.0
      %1359 = vmatpush2.msra.mxu0 0.0
      %1360 = vmatprep.subr.mxu0 0.0
      %1361 = vmatpush2.msra.mxu0 0.0
      %1362 = vmatprep.subr.mxu0 0.0
      %1363 = vmatpush2.msra.mxu0 0.0
      %1364 = vmatprep.subr.mxu0 0.0
      %1365 = vmatpush2.msra.mxu0 0.0
      %1366 = vmatprep.subr.mxu0 0.0
      %1367 = vmatpush2.msra.mxu0 0.0
      %1368 = vmatprep.subr.mxu0 0.0
      %1369 = vmatpush2.msra.mxu0 0.0
      %1370 = vmatprep.subr.mxu0 0.0
      %1371 = vmatpush2.msra.mxu0 0.0
      %1372 = vmatprep.subr.mxu0 0.0
      %1373 = vmatpush2.msra.mxu0 0.0
      %1374 = vmatprep.subr.mxu0 0.0
      %1375 = vmatpush2.msra.mxu0 0.0
      %1376 = vmatprep.subr.mxu0 0.0
      %1377 = vmatpush2.msra.mxu0 0.0
      %1378 = vmatprep.subr.mxu0 0.0
      %1379 = vmatpush2.msra.mxu0 0.0
      %1380 = vmatprep.subr.mxu0 0.0
      %1381 = vmatpush2.msra.mxu0 0.0
      %1382 = vmatprep.subr.mxu0 0.0
      %1383 = vmatpush2.msra.mxu0 0.0
      %1384 = vmatprep.subr.mxu0 0.0
      %1385 = vmatpush2.msra.mxu0 0.0
      %1386 = vmatprep.subr.mxu0 0.0
      %1387 = vmatpush2.msra.mxu0 0.0
      %1388 = vmatprep.subr.mxu0 0.0
      %1389 = vmatpush2.msra.mxu0 0.0
      %1390 = vmatprep.mubr.f32.mxu0 0.0
      %1391 = vmatmul.mubr.f32.gmra.mxu0 %v1312
      %v1392 = vpop.f32.mrf.mxu0
      %v1393 = vadd.f32 0.0, %v1392
      %v1394 = vpop.f32.mrf.mxu0
      %1395 = vmatprep.mubr.f32.mxu0 0.0
      %1396 = vmatmul.mubr.f32.gmra.mxu0 %v1315
      %v1397 = vpop.f32.mrf.mxu0
      %v1398 = vadd.f32 0.0, %v1397
      %v1399 = vpop.f32.mrf.mxu0
      %1400 = vmatprep.mubr.f32.mxu0 0.0
      %1401 = vmatmul.mubr.f32.gmra.mxu0 %v1318
      %v1402 = vpop.f32.mrf.mxu0
      %v1403 = vadd.f32 0.0, %v1402
      %v1404 = vpop.f32.mrf.mxu0
      %1405 = vmatprep.mubr.f32.mxu0 0.0
      %1406 = vmatmul.mubr.f32.gmra.mxu0 %v1321
      %v1407 = vpop.f32.mrf.mxu0
      %v1408 = vadd.f32 0.0, %v1407
      %v1409 = vpop.f32.mrf.mxu0
      %1410 = vdwg.mxu0
      %v1411 = vadd.f32 %v1222, %v1393
      %v1412 = vadd.f32 %v1223, %v1398
      %v1413 = vadd.f32 %v1224, %v1403
      %v1414 = vadd.f32 %v1225, %v1408
      %v1415 = vmax.f32 %v1411, 0.0
      %v1416 = vmax.f32 %v1412, 0.0
      %v1417 = vmax.f32 %v1413, 0.0
      %v1418 = vmax.f32 %v1414, 0.0
      %1419 = vmatprep.subr.mxu0 0.0
      %1420 = vmatpush1.msra.mxu0 0.0
      %1421 = vmatprep.subr.mxu0 0.0
      %1422 = vmatpush1.msra.mxu0 0.0
      %1423 = vmatprep.subr.mxu0 0.0
      %1424 = vmatpush1.msra.mxu0 0.0
      %1425 = vmatprep.subr.mxu0 0.0
      %1426 = vmatpush1.msra.mxu0 0.0
      %1427 = vmatprep.subr.mxu0 0.0
      %1428 = vmatpush1.msra.mxu0 0.0
      %1429 = vmatprep.subr.mxu0 0.0
      %1430 = vmatpush1.msra.mxu0 0.0
      %1431 = vmatprep.subr.mxu0 0.0
      %1432 = vmatpush1.msra.mxu0 0.0
      %1433 = vmatprep.subr.mxu0 0.0
      %1434 = vmatpush1.msra.mxu0 0.0
      %1435 = vmatprep.subr.mxu0 0.0
      %1436 = vmatpush1.msra.mxu0 0.0
      %1437 = vmatprep.subr.mxu0 0.0
      %1438 = vmatpush1.msra.mxu0 0.0
      %1439 = vmatprep.subr.mxu0 0.0
      %1440 = vmatpush1.msra.mxu0 0.0
      %1441 = vmatprep.subr.mxu0 0.0
      %1442 = vmatpush1.msra.mxu0 0.0
      %1443 = vmatprep.subr.mxu0 0.0
      %1444 = vmatpush1.msra.mxu0 %v1418
      %1445 = vmatprep.subr.mxu0 0.0
      %1446 = vmatpush1.msra.mxu0 %v1417
      %1447 = vmatprep.subr.mxu0 0.0
      %1448 = vmatpush1.msra.mxu0 %v1416
      %1449 = vmatprep.subr.mxu0 0.0
      %1450 = vmatpush1.msra.mxu0 %v1415
      %1451 = vmatprep.subr.mxu0 0.0
      %1452 = vmatpush2.msra.mxu0 0.0
      %1453 = vmatprep.subr.mxu0 0.0
      %1454 = vmatpush2.msra.mxu0 0.0
      %1455 = vmatprep.subr.mxu0 0.0
      %1456 = vmatpush2.msra.mxu0 0.0
      %1457 = vmatprep.subr.mxu0 0.0
      %1458 = vmatpush2.msra.mxu0 0.0
      %1459 = vmatprep.subr.mxu0 0.0
      %1460 = vmatpush2.msra.mxu0 0.0
      %1461 = vmatprep.subr.mxu0 0.0
      %1462 = vmatpush2.msra.mxu0 0.0
      %1463 = vmatprep.subr.mxu0 0.0
      %1464 = vmatpush2.msra.mxu0 0.0
      %1465 = vmatprep.subr.mxu0 0.0
      %1466 = vmatpush2.msra.mxu0 0.0
      %1467 = vmatprep.subr.mxu0 0.0
      %1468 = vmatpush2.msra.mxu0 0.0
      %1469 = vmatprep.subr.mxu0 0.0
      %1470 = vmatpush2.msra.mxu0 0.0
      %1471 = vmatprep.subr.mxu0 0.0
      %1472 = vmatpush2.msra.mxu0 0.0
      %1473 = vmatprep.subr.mxu0 0.0
      %1474 = vmatpush2.msra.mxu0 0.0
      %1475 = vmatprep.subr.mxu0 0.0
      %1476 = vmatpush2.msra.mxu0 0.0
      %1477 = vmatprep.subr.mxu0 0.0
      %1478 = vmatpush2.msra.mxu0 0.0
      %1479 = vmatprep.subr.mxu0 0.0
      %1480 = vmatpush2.msra.mxu0 0.0
      %1481 = vmatprep.subr.mxu0 0.0
      %1482 = vmatpush2.msra.mxu0 0.0
      %1483 = vmatprep.mubr.f32.mxu0 0.0
      %1484 = vmatmul.mubr.f32.gmra.mxu0 %v346
      %v1485 = vpop.f32.mrf.mxu0
      %v1486 = vadd.f32 0.0, %v1485
      %v1487 = vpop.f32.mrf.mxu0
      %1488 = vmatprep.mubr.f32.mxu0 0.0
      %1489 = vmatmul.mubr.f32.gmra.mxu0 %v349
      %v1490 = vpop.f32.mrf.mxu0
      %v1491 = vadd.f32 0.0, %v1490
      %v1492 = vpop.f32.mrf.mxu0
      %1493 = vmatprep.mubr.f32.mxu0 0.0
      %1494 = vmatmul.mubr.f32.gmra.mxu0 %v352
      %v1495 = vpop.f32.mrf.mxu0
      %v1496 = vadd.f32 0.0, %v1495
      %v1497 = vpop.f32.mrf.mxu0
      %1498 = vmatprep.mubr.f32.mxu0 0.0
      %1499 = vmatmul.mubr.f32.gmra.mxu0 %v355
      %v1500 = vpop.f32.mrf.mxu0
      %v1501 = vadd.f32 0.0, %v1500
      %v1502 = vpop.f32.mrf.mxu0
      %1503 = vdwg.mxu0
      %v1504 = vmax.f32 %v1415, %v1486
      %v1505 = vmax.f32 %v1416, %v1491
      %v1506 = vmax.f32 %v1417, %v1496
      %v1507 = vmax.f32 %v1418, %v1501
      %1508 = vmatprep.subr.mxu0 0.0
      %1509 = vmatpush1.msra.mxu0 0.0
      %1510 = vmatprep.subr.mxu0 0.0
      %1511 = vmatpush1.msra.mxu0 0.0
      %1512 = vmatprep.subr.mxu0 0.0
      %1513 = vmatpush1.msra.mxu0 0.0
      %1514 = vmatprep.subr.mxu0 0.0
      %1515 = vmatpush1.msra.mxu0 0.0
      %1516 = vmatprep.subr.mxu0 0.0
      %1517 = vmatpush1.msra.mxu0 0.0
      %1518 = vmatprep.subr.mxu0 0.0
      %1519 = vmatpush1.msra.mxu0 0.0
      %1520 = vmatprep.subr.mxu0 0.0
      %1521 = vmatpush1.msra.mxu0 0.0
      %1522 = vmatprep.subr.mxu0 0.0
      %1523 = vmatpush1.msra.mxu0 0.0
      %1524 = vmatprep.subr.mxu0 0.0
      %1525 = vmatpush1.msra.mxu0 0.0
      %1526 = vmatprep.subr.mxu0 0.0
      %1527 = vmatpush1.msra.mxu0 0.0
      %1528 = vmatprep.subr.mxu0 0.0
      %1529 = vmatpush1.msra.mxu0 0.0
      %1530 = vmatprep.subr.mxu0 0.0
      %1531 = vmatpush1.msra.mxu0 0.0
      %1532 = vmatprep.subr.mxu0 0.0
      %1533 = vmatpush1.msra.mxu0 %v1418
      %1534 = vmatprep.subr.mxu0 0.0
      %1535 = vmatpush1.msra.mxu0 %v1417
      %1536 = vmatprep.subr.mxu0 0.0
      %1537 = vmatpush1.msra.mxu0 %v1416
      %1538 = vmatprep.subr.mxu0 0.0
      %1539 = vmatpush1.msra.mxu0 %v1415
      %1540 = vmatprep.subr.mxu0 0.0
      %1541 = vmatpush2.msra.mxu0 0.0
      %1542 = vmatprep.subr.mxu0 0.0
      %1543 = vmatpush2.msra.mxu0 0.0
      %1544 = vmatprep.subr.mxu0 0.0
      %1545 = vmatpush2.msra.mxu0 0.0
      %1546 = vmatprep.subr.mxu0 0.0
      %1547 = vmatpush2.msra.mxu0 0.0
      %1548 = vmatprep.subr.mxu0 0.0
      %1549 = vmatpush2.msra.mxu0 0.0
      %1550 = vmatprep.subr.mxu0 0.0
      %1551 = vmatpush2.msra.mxu0 0.0
      %1552 = vmatprep.subr.mxu0 0.0
      %1553 = vmatpush2.msra.mxu0 0.0
      %1554 = vmatprep.subr.mxu0 0.0
      %1555 = vmatpush2.msra.mxu0 0.0
      %1556 = vmatprep.subr.mxu0 0.0
      %1557 = vmatpush2.msra.mxu0 0.0
      %1558 = vmatprep.subr.mxu0 0.0
      %1559 = vmatpush2.msra.mxu0 0.0
      %1560 = vmatprep.subr.mxu0 0.0
      %1561 = vmatpush2.msra.mxu0 0.0
      %1562 = vmatprep.subr.mxu0 0.0
      %1563 = vmatpush2.msra.mxu0 0.0
      %1564 = vmatprep.subr.mxu0 0.0
      %1565 = vmatpush2.msra.mxu0 0.0
      %1566 = vmatprep.subr.mxu0 0.0
      %1567 = vmatpush2.msra.mxu0 0.0
      %1568 = vmatprep.subr.mxu0 0.0
      %1569 = vmatpush2.msra.mxu0 0.0
      %1570 = vmatprep.subr.mxu0 0.0
      %1571 = vmatpush2.msra.mxu0 0.0
      %1572 = vmatprep.mubr.f32.mxu0 0.0
      %1573 = vmatmul.mubr.f32.gmra.mxu0 %v544
      %v1574 = vpop.f32.mrf.mxu0
      %v1575 = vadd.f32 0.0, %v1574
      %v1576 = vpop.f32.mrf.mxu0
      %1577 = vmatprep.mubr.f32.mxu0 0.0
      %1578 = vmatmul.mubr.f32.gmra.mxu0 %v547
      %v1579 = vpop.f32.mrf.mxu0
      %v1580 = vadd.f32 0.0, %v1579
      %v1581 = vpop.f32.mrf.mxu0
      %1582 = vmatprep.mubr.f32.mxu0 0.0
      %1583 = vmatmul.mubr.f32.gmra.mxu0 %v550
      %v1584 = vpop.f32.mrf.mxu0
      %v1585 = vadd.f32 0.0, %v1584
      %v1586 = vpop.f32.mrf.mxu0
      %1587 = vmatprep.mubr.f32.mxu0 0.0
      %1588 = vmatmul.mubr.f32.gmra.mxu0 %v553
      %v1589 = vpop.f32.mrf.mxu0
      %v1590 = vadd.f32 0.0, %v1589
      %v1591 = vpop.f32.mrf.mxu0
      %1592 = vdwg.mxu0
      %v1593 = vmax.f32 %v1504, %v1575
      %v1594 = vmax.f32 %v1505, %v1580
      %v1595 = vmax.f32 %v1506, %v1585
      %v1596 = vmax.f32 %v1507, %v1590
      %v1597 = vmul.f32 %v1593, %v181
      %v1598 = vmul.f32 %v1594, %v182
      %v1599 = vmul.f32 %v1595, %v183
      %v1600 = vmul.f32 %v1596, %v184
      %v1602 = vsel %vm344, %v222, 0
      %1604 = vmatprep.subr.mxu0 0.0
      %1605 = vmatpush1.msra.mxu0 0.0
      %1606 = vmatprep.subr.mxu0 0.0
      %1607 = vmatpush1.msra.mxu0 0.0
      %1608 = vmatprep.subr.mxu0 0.0
      %1609 = vmatpush1.msra.mxu0 0.0
      %1610 = vmatprep.subr.mxu0 0.0
      %1611 = vmatpush1.msra.mxu0 0.0
      %1612 = vmatprep.subr.mxu0 0.0
      %1613 = vmatpush1.msra.mxu0 0.0
      %1614 = vmatprep.subr.mxu0 0.0
      %1615 = vmatpush1.msra.mxu0 0.0
      %1616 = vmatprep.subr.mxu0 0.0
      %1617 = vmatpush1.msra.mxu0 0.0
      %1618 = vmatprep.subr.mxu0 0.0
      %1619 = vmatpush1.msra.mxu0 0.0
      %1620 = vmatprep.subr.mxu0 0.0
      %1621 = vmatpush1.msra.mxu0 0.0
      %1622 = vmatprep.subr.mxu0 0.0
      %1623 = vmatpush1.msra.mxu0 0.0
      %1624 = vmatprep.subr.mxu0 0.0
      %1625 = vmatpush1.msra.mxu0 0.0
      %1626 = vmatprep.subr.mxu0 0.0
      %1627 = vmatpush1.msra.mxu0 0.0
      %1628 = vmatprep.subr.mxu0 0.0
      %1629 = vmatpush1.msra.mxu0 %v1600
      %1630 = vmatprep.subr.mxu0 0.0
      %1631 = vmatpush1.msra.mxu0 %v1599
      %1632 = vmatprep.subr.mxu0 0.0
      %1633 = vmatpush1.msra.mxu0 %v1598
      %1634 = vmatprep.subr.mxu0 0.0
      %1635 = vmatpush1.msra.mxu0 %v1597
      %1636 = vmatprep.subr.mxu0 0.0
      %1637 = vmatpush2.msra.mxu0 0.0
      %1638 = vmatprep.subr.mxu0 0.0
      %1639 = vmatpush2.msra.mxu0 0.0
      %1640 = vmatprep.subr.mxu0 0.0
      %1641 = vmatpush2.msra.mxu0 0.0
      %1642 = vmatprep.subr.mxu0 0.0
      %1643 = vmatpush2.msra.mxu0 0.0
      %1644 = vmatprep.subr.mxu0 0.0
      %1645 = vmatpush2.msra.mxu0 0.0
      %1646 = vmatprep.subr.mxu0 0.0
      %1647 = vmatpush2.msra.mxu0 0.0
      %1648 = vmatprep.subr.mxu0 0.0
      %1649 = vmatpush2.msra.mxu0 0.0
      %1650 = vmatprep.subr.mxu0 0.0
      %1651 = vmatpush2.msra.mxu0 0.0
      %1652 = vmatprep.subr.mxu0 0.0
      %1653 = vmatpush2.msra.mxu0 0.0
      %1654 = vmatprep.subr.mxu0 0.0
      %1655 = vmatpush2.msra.mxu0 0.0
      %1656 = vmatprep.subr.mxu0 0.0
      %1657 = vmatpush2.msra.mxu0 0.0
      %1658 = vmatprep.subr.mxu0 0.0
      %1659 = vmatpush2.msra.mxu0 0.0
      %1660 = vmatprep.subr.mxu0 0.0
      %1661 = vmatpush2.msra.mxu0 0.0
      %1662 = vmatprep.subr.mxu0 0.0
      %1663 = vmatpush2.msra.mxu0 0.0
      %1664 = vmatprep.subr.mxu0 0.0
      %1665 = vmatpush2.msra.mxu0 0.0
      %1666 = vmatprep.subr.mxu0 0.0
      %1667 = vmatpush2.msra.mxu0 0.0
      %1668 = vmatprep.mubr.f32.mxu0 0.0
      %1669 = vmatmul.mubr.f32.gmra.mxu0 %v1602
      %v1670 = vpop.f32.mrf.mxu0
      %v1671 = vadd.f32 0.0, %v1670
      %v1672 = vpop.f32.mrf.mxu0
      %1673 = vdwg.mxu0
      %v1675 = vsel %vm927, %v1671, 0
      %v1678 = vsel %vm940, %v203, 0
      %1680 = vmatprep.subr.mxu0 0.0
      %1681 = vmatpush1.msra.mxu0 0.0
      %1682 = vmatprep.subr.mxu0 0.0
      %1683 = vmatpush1.msra.mxu0 0.0
      %1684 = vmatprep.subr.mxu0 0.0
      %1685 = vmatpush1.msra.mxu0 0.0
      %1686 = vmatprep.subr.mxu0 0.0
      %1687 = vmatpush1.msra.mxu0 0.0
      %1688 = vmatprep.subr.mxu0 0.0
      %1689 = vmatpush1.msra.mxu0 0.0
      %1690 = vmatprep.subr.mxu0 0.0
      %1691 = vmatpush1.msra.mxu0 0.0
      %1692 = vmatprep.subr.mxu0 0.0
      %1693 = vmatpush1.msra.mxu0 0.0
      %1694 = vmatprep.subr.mxu0 0.0
      %1695 = vmatpush1.msra.mxu0 0.0
      %1696 = vmatprep.subr.mxu0 0.0
      %1697 = vmatpush1.msra.mxu0 0.0
      %1698 = vmatprep.subr.mxu0 0.0
      %1699 = vmatpush1.msra.mxu0 0.0
      %1700 = vmatprep.subr.mxu0 0.0
      %1701 = vmatpush1.msra.mxu0 0.0
      %1702 = vmatprep.subr.mxu0 0.0
      %1703 = vmatpush1.msra.mxu0 0.0
      %1704 = vmatprep.subr.mxu0 0.0
      %1705 = vmatpush1.msra.mxu0 0.0
      %1706 = vmatprep.subr.mxu0 0.0
      %1707 = vmatpush1.msra.mxu0 %v1678
      %1708 = vmatprep.subr.mxu0 0.0
      %1709 = vmatpush1.msra.mxu0 %v202
      %1710 = vmatprep.subr.mxu0 0.0
      %1711 = vmatpush1.msra.mxu0 %v201
      %1712 = vmatprep.subr.mxu0 0.0
      %1713 = vmatpush2.msra.mxu0 0.0
      %1714 = vmatprep.subr.mxu0 0.0
      %1715 = vmatpush2.msra.mxu0 0.0
      %1716 = vmatprep.subr.mxu0 0.0
      %1717 = vmatpush2.msra.mxu0 0.0
      %1718 = vmatprep.subr.mxu0 0.0
      %1719 = vmatpush2.msra.mxu0 0.0
      %1720 = vmatprep.subr.mxu0 0.0
      %1721 = vmatpush2.msra.mxu0 0.0
      %1722 = vmatprep.subr.mxu0 0.0
      %1723 = vmatpush2.msra.mxu0 0.0
      %1724 = vmatprep.subr.mxu0 0.0
      %1725 = vmatpush2.msra.mxu0 0.0
      %1726 = vmatprep.subr.mxu0 0.0
      %1727 = vmatpush2.msra.mxu0 0.0
      %1728 = vmatprep.subr.mxu0 0.0
      %1729 = vmatpush2.msra.mxu0 0.0
      %1730 = vmatprep.subr.mxu0 0.0
      %1731 = vmatpush2.msra.mxu0 0.0
      %1732 = vmatprep.subr.mxu0 0.0
      %1733 = vmatpush2.msra.mxu0 0.0
      %1734 = vmatprep.subr.mxu0 0.0
      %1735 = vmatpush2.msra.mxu0 0.0
      %1736 = vmatprep.subr.mxu0 0.0
      %1737 = vmatpush2.msra.mxu0 0.0
      %1738 = vmatprep.subr.mxu0 0.0
      %1739 = vmatpush2.msra.mxu0 0.0
      %1740 = vmatprep.subr.mxu0 0.0
      %1741 = vmatpush2.msra.mxu0 0.0
      %1742 = vmatprep.subr.mxu0 0.0
      %1743 = vmatpush2.msra.mxu0 0.0
      %1744 = vmatprep.mubr.f32.mxu0 0.0
      %1745 = vmatmul.mubr.f32.gmra.mxu0 %v1675
      %v1746 = vpop.f32.mrf.mxu0
      %v1747 = vadd.f32 0.0, %v1746
      %v1748 = vpop.f32.mrf.mxu0
      %1749 = vdwg.mxu0
      %v1750 = vlaneseq
      %v1751 = vshrl.u32 %v1750, 7
      %v1752 = vsub.s32 0, %v1751
      %v1753 = vrot.slane %v213, %v1752
      %v1754 = vadd.f32 %v1753, %v1747
      %v1756 = vsel %vm344, %v223, 0
      %1758 = vmatprep.subr.mxu0 0.0
      %1759 = vmatpush1.msra.mxu0 0.0
      %1760 = vmatprep.subr.mxu0 0.0
      %1761 = vmatpush1.msra.mxu0 0.0
      %1762 = vmatprep.subr.mxu0 0.0
      %1763 = vmatpush1.msra.mxu0 0.0
      %1764 = vmatprep.subr.mxu0 0.0
      %1765 = vmatpush1.msra.mxu0 0.0
      %1766 = vmatprep.subr.mxu0 0.0
      %1767 = vmatpush1.msra.mxu0 0.0
      %1768 = vmatprep.subr.mxu0 0.0
      %1769 = vmatpush1.msra.mxu0 0.0
      %1770 = vmatprep.subr.mxu0 0.0
      %1771 = vmatpush1.msra.mxu0 0.0
      %1772 = vmatprep.subr.mxu0 0.0
      %1773 = vmatpush1.msra.mxu0 0.0
      %1774 = vmatprep.subr.mxu0 0.0
      %1775 = vmatpush1.msra.mxu0 0.0
      %1776 = vmatprep.subr.mxu0 0.0
      %1777 = vmatpush1.msra.mxu0 0.0
      %1778 = vmatprep.subr.mxu0 0.0
      %1779 = vmatpush1.msra.mxu0 0.0
      %1780 = vmatprep.subr.mxu0 0.0
      %1781 = vmatpush1.msra.mxu0 0.0
      %1782 = vmatprep.subr.mxu0 0.0
      %1783 = vmatpush1.msra.mxu0 %v1600
      %1784 = vmatprep.subr.mxu0 0.0
      %1785 = vmatpush1.msra.mxu0 %v1599
      %1786 = vmatprep.subr.mxu0 0.0
      %1787 = vmatpush1.msra.mxu0 %v1598
      %1788 = vmatprep.subr.mxu0 0.0
      %1789 = vmatpush1.msra.mxu0 %v1597
      %1790 = vmatprep.subr.mxu0 0.0
      %1791 = vmatpush2.msra.mxu0 0.0
      %1792 = vmatprep.subr.mxu0 0.0
      %1793 = vmatpush2.msra.mxu0 0.0
      %1794 = vmatprep.subr.mxu0 0.0
      %1795 = vmatpush2.msra.mxu0 0.0
      %1796 = vmatprep.subr.mxu0 0.0
      %1797 = vmatpush2.msra.mxu0 0.0
      %1798 = vmatprep.subr.mxu0 0.0
      %1799 = vmatpush2.msra.mxu0 0.0
      %1800 = vmatprep.subr.mxu0 0.0
      %1801 = vmatpush2.msra.mxu0 0.0
      %1802 = vmatprep.subr.mxu0 0.0
      %1803 = vmatpush2.msra.mxu0 0.0
      %1804 = vmatprep.subr.mxu0 0.0
      %1805 = vmatpush2.msra.mxu0 0.0
      %1806 = vmatprep.subr.mxu0 0.0
      %1807 = vmatpush2.msra.mxu0 0.0
      %1808 = vmatprep.subr.mxu0 0.0
      %1809 = vmatpush2.msra.mxu0 0.0
      %1810 = vmatprep.subr.mxu0 0.0
      %1811 = vmatpush2.msra.mxu0 0.0
      %1812 = vmatprep.subr.mxu0 0.0
      %1813 = vmatpush2.msra.mxu0 0.0
      %1814 = vmatprep.subr.mxu0 0.0
      %1815 = vmatpush2.msra.mxu0 0.0
      %1816 = vmatprep.subr.mxu0 0.0
      %1817 = vmatpush2.msra.mxu0 0.0
      %1818 = vmatprep.subr.mxu0 0.0
      %1819 = vmatpush2.msra.mxu0 0.0
      %1820 = vmatprep.subr.mxu0 0.0
      %1821 = vmatpush2.msra.mxu0 0.0
      %1822 = vmatprep.mubr.f32.mxu0 0.0
      %1823 = vmatmul.mubr.f32.gmra.mxu0 %v1756
      %v1824 = vpop.f32.mrf.mxu0
      %v1825 = vadd.f32 0.0, %v1824
      %v1826 = vpop.f32.mrf.mxu0
      %1827 = vdwg.mxu0
      %v1829 = vsel %vm927, %v1825, 0
      %v1832 = vsel %vm940, %v206, 0
      %1834 = vmatprep.subr.mxu0 0.0
      %1835 = vmatpush1.msra.mxu0 0.0
      %1836 = vmatprep.subr.mxu0 0.0
      %1837 = vmatpush1.msra.mxu0 0.0
      %1838 = vmatprep.subr.mxu0 0.0
      %1839 = vmatpush1.msra.mxu0 0.0
      %1840 = vmatprep.subr.mxu0 0.0
      %1841 = vmatpush1.msra.mxu0 0.0
      %1842 = vmatprep.subr.mxu0 0.0
      %1843 = vmatpush1.msra.mxu0 0.0
      %1844 = vmatprep.subr.mxu0 0.0
      %1845 = vmatpush1.msra.mxu0 0.0
      %1846 = vmatprep.subr.mxu0 0.0
      %1847 = vmatpush1.msra.mxu0 0.0
      %1848 = vmatprep.subr.mxu0 0.0
      %1849 = vmatpush1.msra.mxu0 0.0
      %1850 = vmatprep.subr.mxu0 0.0
      %1851 = vmatpush1.msra.mxu0 0.0
      %1852 = vmatprep.subr.mxu0 0.0
      %1853 = vmatpush1.msra.mxu0 0.0
      %1854 = vmatprep.subr.mxu0 0.0
      %1855 = vmatpush1.msra.mxu0 0.0
      %1856 = vmatprep.subr.mxu0 0.0
      %1857 = vmatpush1.msra.mxu0 0.0
      %1858 = vmatprep.subr.mxu0 0.0
      %1859 = vmatpush1.msra.mxu0 0.0
      %1860 = vmatprep.subr.mxu0 0.0
      %1861 = vmatpush1.msra.mxu0 %v1832
      %1862 = vmatprep.subr.mxu0 0.0
      %1863 = vmatpush1.msra.mxu0 %v205
      %1864 = vmatprep.subr.mxu0 0.0
      %1865 = vmatpush1.msra.mxu0 %v204
      %1866 = vmatprep.subr.mxu0 0.0
      %1867 = vmatpush2.msra.mxu0 0.0
      %1868 = vmatprep.subr.mxu0 0.0
      %1869 = vmatpush2.msra.mxu0 0.0
      %1870 = vmatprep.subr.mxu0 0.0
      %1871 = vmatpush2.msra.mxu0 0.0
      %1872 = vmatprep.subr.mxu0 0.0
      %1873 = vmatpush2.msra.mxu0 0.0
      %1874 = vmatprep.subr.mxu0 0.0
      %1875 = vmatpush2.msra.mxu0 0.0
      %1876 = vmatprep.subr.mxu0 0.0
      %1877 = vmatpush2.msra.mxu0 0.0
      %1878 = vmatprep.subr.mxu0 0.0
      %1879 = vmatpush2.msra.mxu0 0.0
      %1880 = vmatprep.subr.mxu0 0.0
      %1881 = vmatpush2.msra.mxu0 0.0
      %1882 = vmatprep.subr.mxu0 0.0
      %1883 = vmatpush2.msra.mxu0 0.0
      %1884 = vmatprep.subr.mxu0 0.0
      %1885 = vmatpush2.msra.mxu0 0.0
      %1886 = vmatprep.subr.mxu0 0.0
      %1887 = vmatpush2.msra.mxu0 0.0
      %1888 = vmatprep.subr.mxu0 0.0
      %1889 = vmatpush2.msra.mxu0 0.0
      %1890 = vmatprep.subr.mxu0 0.0
      %1891 = vmatpush2.msra.mxu0 0.0
      %1892 = vmatprep.subr.mxu0 0.0
      %1893 = vmatpush2.msra.mxu0 0.0
      %1894 = vmatprep.subr.mxu0 0.0
      %1895 = vmatpush2.msra.mxu0 0.0
      %1896 = vmatprep.subr.mxu0 0.0
      %1897 = vmatpush2.msra.mxu0 0.0
      %1898 = vmatprep.mubr.f32.mxu0 0.0
      %1899 = vmatmul.mubr.f32.gmra.mxu0 %v1829
      %v1900 = vpop.f32.mrf.mxu0
      %v1901 = vadd.f32 0.0, %v1900
      %v1902 = vpop.f32.mrf.mxu0
      %1903 = vdwg.mxu0
      %v1904 = vadd.f32 %v1754, %v1901
      %v1906 = vsel %vm344, %v224, 0
      %1908 = vmatprep.subr.mxu0 0.0
      %1909 = vmatpush1.msra.mxu0 0.0
      %1910 = vmatprep.subr.mxu0 0.0
      %1911 = vmatpush1.msra.mxu0 0.0
      %1912 = vmatprep.subr.mxu0 0.0
      %1913 = vmatpush1.msra.mxu0 0.0
      %1914 = vmatprep.subr.mxu0 0.0
      %1915 = vmatpush1.msra.mxu0 0.0
      %1916 = vmatprep.subr.mxu0 0.0
      %1917 = vmatpush1.msra.mxu0 0.0
      %1918 = vmatprep.subr.mxu0 0.0
      %1919 = vmatpush1.msra.mxu0 0.0
      %1920 = vmatprep.subr.mxu0 0.0
      %1921 = vmatpush1.msra.mxu0 0.0
      %1922 = vmatprep.subr.mxu0 0.0
      %1923 = vmatpush1.msra.mxu0 0.0
      %1924 = vmatprep.subr.mxu0 0.0
      %1925 = vmatpush1.msra.mxu0 0.0
      %1926 = vmatprep.subr.mxu0 0.0
      %1927 = vmatpush1.msra.mxu0 0.0
      %1928 = vmatprep.subr.mxu0 0.0
      %1929 = vmatpush1.msra.mxu0 0.0
      %1930 = vmatprep.subr.mxu0 0.0
      %1931 = vmatpush1.msra.mxu0 0.0
      %1932 = vmatprep.subr.mxu0 0.0
      %1933 = vmatpush1.msra.mxu0 %v1600
      %1934 = vmatprep.subr.mxu0 0.0
      %1935 = vmatpush1.msra.mxu0 %v1599
      %1936 = vmatprep.subr.mxu0 0.0
      %1937 = vmatpush1.msra.mxu0 %v1598
      %1938 = vmatprep.subr.mxu0 0.0
      %1939 = vmatpush1.msra.mxu0 %v1597
      %1940 = vmatprep.subr.mxu0 0.0
      %1941 = vmatpush2.msra.mxu0 0.0
      %1942 = vmatprep.subr.mxu0 0.0
      %1943 = vmatpush2.msra.mxu0 0.0
      %1944 = vmatprep.subr.mxu0 0.0
      %1945 = vmatpush2.msra.mxu0 0.0
      %1946 = vmatprep.subr.mxu0 0.0
      %1947 = vmatpush2.msra.mxu0 0.0
      %1948 = vmatprep.subr.mxu0 0.0
      %1949 = vmatpush2.msra.mxu0 0.0
      %1950 = vmatprep.subr.mxu0 0.0
      %1951 = vmatpush2.msra.mxu0 0.0
      %1952 = vmatprep.subr.mxu0 0.0
      %1953 = vmatpush2.msra.mxu0 0.0
      %1954 = vmatprep.subr.mxu0 0.0
      %1955 = vmatpush2.msra.mxu0 0.0
      %1956 = vmatprep.subr.mxu0 0.0
      %1957 = vmatpush2.msra.mxu0 0.0
      %1958 = vmatprep.subr.mxu0 0.0
      %1959 = vmatpush2.msra.mxu0 0.0
      %1960 = vmatprep.subr.mxu0 0.0
      %1961 = vmatpush2.msra.mxu0 0.0
      %1962 = vmatprep.subr.mxu0 0.0
      %1963 = vmatpush2.msra.mxu0 0.0
      %1964 = vmatprep.subr.mxu0 0.0
      %1965 = vmatpush2.msra.mxu0 0.0
      %1966 = vmatprep.subr.mxu0 0.0
      %1967 = vmatpush2.msra.mxu0 0.0
      %1968 = vmatprep.subr.mxu0 0.0
      %1969 = vmatpush2.msra.mxu0 0.0
      %1970 = vmatprep.subr.mxu0 0.0
      %1971 = vmatpush2.msra.mxu0 0.0
      %1972 = vmatprep.mubr.f32.mxu0 0.0
      %1973 = vmatmul.mubr.f32.gmra.mxu0 %v1906
      %v1974 = vpop.f32.mrf.mxu0
      %v1975 = vadd.f32 0.0, %v1974
      %v1976 = vpop.f32.mrf.mxu0
      %1977 = vdwg.mxu0
      %v1979 = vsel %vm927, %v1975, 0
      %v1982 = vsel %vm940, %v209, 0
      %1984 = vmatprep.subr.mxu0 0.0
      %1985 = vmatpush1.msra.mxu0 0.0
      %1986 = vmatprep.subr.mxu0 0.0
      %1987 = vmatpush1.msra.mxu0 0.0
      %1988 = vmatprep.subr.mxu0 0.0
      %1989 = vmatpush1.msra.mxu0 0.0
      %1990 = vmatprep.subr.mxu0 0.0
      %1991 = vmatpush1.msra.mxu0 0.0
      %1992 = vmatprep.subr.mxu0 0.0
      %1993 = vmatpush1.msra.mxu0 0.0
      %1994 = vmatprep.subr.mxu0 0.0
      %1995 = vmatpush1.msra.mxu0 0.0
      %1996 = vmatprep.subr.mxu0 0.0
      %1997 = vmatpush1.msra.mxu0 0.0
      %1998 = vmatprep.subr.mxu0 0.0
      %1999 = vmatpush1.msra.mxu0 0.0
      %2000 = vmatprep.subr.mxu0 0.0
      %2001 = vmatpush1.msra.mxu0 0.0
      %2002 = vmatprep.subr.mxu0 0.0
      %2003 = vmatpush1.msra.mxu0 0.0
      %2004 = vmatprep.subr.mxu0 0.0
      %2005 = vmatpush1.msra.mxu0 0.0
      %2006 = vmatprep.subr.mxu0 0.0
      %2007 = vmatpush1.msra.mxu0 0.0
      %2008 = vmatprep.subr.mxu0 0.0
      %2009 = vmatpush1.msra.mxu0 0.0
      %2010 = vmatprep.subr.mxu0 0.0
      %2011 = vmatpush1.msra.mxu0 %v1982
      %2012 = vmatprep.subr.mxu0 0.0
      %2013 = vmatpush1.msra.mxu0 %v208
      %2014 = vmatprep.subr.mxu0 0.0
      %2015 = vmatpush1.msra.mxu0 %v207
      %2016 = vmatprep.subr.mxu0 0.0
      %2017 = vmatpush2.msra.mxu0 0.0
      %2018 = vmatprep.subr.mxu0 0.0
      %2019 = vmatpush2.msra.mxu0 0.0
      %2020 = vmatprep.subr.mxu0 0.0
      %2021 = vmatpush2.msra.mxu0 0.0
      %2022 = vmatprep.subr.mxu0 0.0
      %2023 = vmatpush2.msra.mxu0 0.0
      %2024 = vmatprep.subr.mxu0 0.0
      %2025 = vmatpush2.msra.mxu0 0.0
      %2026 = vmatprep.subr.mxu0 0.0
      %2027 = vmatpush2.msra.mxu0 0.0
      %2028 = vmatprep.subr.mxu0 0.0
      %2029 = vmatpush2.msra.mxu0 0.0
      %2030 = vmatprep.subr.mxu0 0.0
      %2031 = vmatpush2.msra.mxu0 0.0
      %2032 = vmatprep.subr.mxu0 0.0
      %2033 = vmatpush2.msra.mxu0 0.0
      %2034 = vmatprep.subr.mxu0 0.0
      %2035 = vmatpush2.msra.mxu0 0.0
      %2036 = vmatprep.subr.mxu0 0.0
      %2037 = vmatpush2.msra.mxu0 0.0
      %2038 = vmatprep.subr.mxu0 0.0
      %2039 = vmatpush2.msra.mxu0 0.0
      %2040 = vmatprep.subr.mxu0 0.0
      %2041 = vmatpush2.msra.mxu0 0.0
      %2042 = vmatprep.subr.mxu0 0.0
      %2043 = vmatpush2.msra.mxu0 0.0
      %2044 = vmatprep.subr.mxu0 0.0
      %2045 = vmatpush2.msra.mxu0 0.0
      %2046 = vmatprep.subr.mxu0 0.0
      %2047 = vmatpush2.msra.mxu0 0.0
      %2048 = vmatprep.mubr.f32.mxu0 0.0
      %2049 = vmatmul.mubr.f32.gmra.mxu0 %v1979
      %v2050 = vpop.f32.mrf.mxu0
      %v2051 = vadd.f32 0.0, %v2050
      %v2052 = vpop.f32.mrf.mxu0
      %2053 = vdwg.mxu0
      %v2054 = vadd.f32 %v1904, %v2051
      %v2056 = vsel %vm344, %v225, 0
      %2058 = vmatprep.subr.mxu0 0.0
      %2059 = vmatpush1.msra.mxu0 0.0
      %2060 = vmatprep.subr.mxu0 0.0
      %2061 = vmatpush1.msra.mxu0 0.0
      %2062 = vmatprep.subr.mxu0 0.0
      %2063 = vmatpush1.msra.mxu0 0.0
      %2064 = vmatprep.subr.mxu0 0.0
      %2065 = vmatpush1.msra.mxu0 0.0
      %2066 = vmatprep.subr.mxu0 0.0
      %2067 = vmatpush1.msra.mxu0 0.0
      %2068 = vmatprep.subr.mxu0 0.0
      %2069 = vmatpush1.msra.mxu0 0.0
      %2070 = vmatprep.subr.mxu0 0.0
      %2071 = vmatpush1.msra.mxu0 0.0
      %2072 = vmatprep.subr.mxu0 0.0
      %2073 = vmatpush1.msra.mxu0 0.0
      %2074 = vmatprep.subr.mxu0 0.0
      %2075 = vmatpush1.msra.mxu0 0.0
      %2076 = vmatprep.subr.mxu0 0.0
      %2077 = vmatpush1.msra.mxu0 0.0
      %2078 = vmatprep.subr.mxu0 0.0
      %2079 = vmatpush1.msra.mxu0 0.0
      %2080 = vmatprep.subr.mxu0 0.0
      %2081 = vmatpush1.msra.mxu0 0.0
      %2082 = vmatprep.subr.mxu0 0.0
      %2083 = vmatpush1.msra.mxu0 %v1600
      %2084 = vmatprep.subr.mxu0 0.0
      %2085 = vmatpush1.msra.mxu0 %v1599
      %2086 = vmatprep.subr.mxu0 0.0
      %2087 = vmatpush1.msra.mxu0 %v1598
      %2088 = vmatprep.subr.mxu0 0.0
      %2089 = vmatpush1.msra.mxu0 %v1597
      %2090 = vmatprep.subr.mxu0 0.0
      %2091 = vmatpush2.msra.mxu0 0.0
      %2092 = vmatprep.subr.mxu0 0.0
      %2093 = vmatpush2.msra.mxu0 0.0
      %2094 = vmatprep.subr.mxu0 0.0
      %2095 = vmatpush2.msra.mxu0 0.0
      %2096 = vmatprep.subr.mxu0 0.0
      %2097 = vmatpush2.msra.mxu0 0.0
      %2098 = vmatprep.subr.mxu0 0.0
      %2099 = vmatpush2.msra.mxu0 0.0
      %2100 = vmatprep.subr.mxu0 0.0
      %2101 = vmatpush2.msra.mxu0 0.0
      %2102 = vmatprep.subr.mxu0 0.0
      %2103 = vmatpush2.msra.mxu0 0.0
      %2104 = vmatprep.subr.mxu0 0.0
      %2105 = vmatpush2.msra.mxu0 0.0
      %2106 = vmatprep.subr.mxu0 0.0
      %2107 = vmatpush2.msra.mxu0 0.0
      %2108 = vmatprep.subr.mxu0 0.0
      %2109 = vmatpush2.msra.mxu0 0.0
      %2110 = vmatprep.subr.mxu0 0.0
      %2111 = vmatpush2.msra.mxu0 0.0
      %2112 = vmatprep.subr.mxu0 0.0
      %2113 = vmatpush2.msra.mxu0 0.0
      %2114 = vmatprep.subr.mxu0 0.0
      %2115 = vmatpush2.msra.mxu0 0.0
      %2116 = vmatprep.subr.mxu0 0.0
      %2117 = vmatpush2.msra.mxu0 0.0
      %2118 = vmatprep.subr.mxu0 0.0
      %2119 = vmatpush2.msra.mxu0 0.0
      %2120 = vmatprep.subr.mxu0 0.0
      %2121 = vmatpush2.msra.mxu0 0.0
      %2122 = vmatprep.mubr.f32.mxu0 0.0
      %2123 = vmatmul.mubr.f32.gmra.mxu0 %v2056
      %v2124 = vpop.f32.mrf.mxu0
      %v2125 = vadd.f32 0.0, %v2124
      %v2126 = vpop.f32.mrf.mxu0
      %2127 = vdwg.mxu0
      %v2129 = vsel %vm927, %v2125, 0
      %v2132 = vsel %vm940, %v212, 0
      %2134 = vmatprep.subr.mxu0 0.0
      %2135 = vmatpush1.msra.mxu0 0.0
      %2136 = vmatprep.subr.mxu0 0.0
      %2137 = vmatpush1.msra.mxu0 0.0
      %2138 = vmatprep.subr.mxu0 0.0
      %2139 = vmatpush1.msra.mxu0 0.0
      %2140 = vmatprep.subr.mxu0 0.0
      %2141 = vmatpush1.msra.mxu0 0.0
      %2142 = vmatprep.subr.mxu0 0.0
      %2143 = vmatpush1.msra.mxu0 0.0
      %2144 = vmatprep.subr.mxu0 0.0
      %2145 = vmatpush1.msra.mxu0 0.0
      %2146 = vmatprep.subr.mxu0 0.0
      %2147 = vmatpush1.msra.mxu0 0.0
      %2148 = vmatprep.subr.mxu0 0.0
      %2149 = vmatpush1.msra.mxu0 0.0
      %2150 = vmatprep.subr.mxu0 0.0
      %2151 = vmatpush1.msra.mxu0 0.0
      %2152 = vmatprep.subr.mxu0 0.0
      %2153 = vmatpush1.msra.mxu0 0.0
      %2154 = vmatprep.subr.mxu0 0.0
      %2155 = vmatpush1.msra.mxu0 0.0
      %2156 = vmatprep.subr.mxu0 0.0
      %2157 = vmatpush1.msra.mxu0 0.0
      %2158 = vmatprep.subr.mxu0 0.0
      %2159 = vmatpush1.msra.mxu0 0.0
      %2160 = vmatprep.subr.mxu0 0.0
      %2161 = vmatpush1.msra.mxu0 %v2132
      %2162 = vmatprep.subr.mxu0 0.0
      %2163 = vmatpush1.msra.mxu0 %v211
      %2164 = vmatprep.subr.mxu0 0.0
      %2165 = vmatpush1.msra.mxu0 %v210
      %2166 = vmatprep.subr.mxu0 0.0
      %2167 = vmatpush2.msra.mxu0 0.0
      %2168 = vmatprep.subr.mxu0 0.0
      %2169 = vmatpush2.msra.mxu0 0.0
      %2170 = vmatprep.subr.mxu0 0.0
      %2171 = vmatpush2.msra.mxu0 0.0
      %2172 = vmatprep.subr.mxu0 0.0
      %2173 = vmatpush2.msra.mxu0 0.0
      %2174 = vmatprep.subr.mxu0 0.0
      %2175 = vmatpush2.msra.mxu0 0.0
      %2176 = vmatprep.subr.mxu0 0.0
      %2177 = vmatpush2.msra.mxu0 0.0
      %2178 = vmatprep.subr.mxu0 0.0
      %2179 = vmatpush2.msra.mxu0 0.0
      %2180 = vmatprep.subr.mxu0 0.0
      %2181 = vmatpush2.msra.mxu0 0.0
      %2182 = vmatprep.subr.mxu0 0.0
      %2183 = vmatpush2.msra.mxu0 0.0
      %2184 = vmatprep.subr.mxu0 0.0
      %2185 = vmatpush2.msra.mxu0 0.0
      %2186 = vmatprep.subr.mxu0 0.0
      %2187 = vmatpush2.msra.mxu0 0.0
      %2188 = vmatprep.subr.mxu0 0.0
      %2189 = vmatpush2.msra.mxu0 0.0
      %2190 = vmatprep.subr.mxu0 0.0
      %2191 = vmatpush2.msra.mxu0 0.0
      %2192 = vmatprep.subr.mxu0 0.0
      %2193 = vmatpush2.msra.mxu0 0.0
      %2194 = vmatprep.subr.mxu0 0.0
      %2195 = vmatpush2.msra.mxu0 0.0
      %2196 = vmatprep.subr.mxu0 0.0
      %2197 = vmatpush2.msra.mxu0 0.0
      %2198 = vmatprep.mubr.f32.mxu0 0.0
      %2199 = vmatmul.mubr.f32.gmra.mxu0 %v2129
      %v2200 = vpop.f32.mrf.mxu0
      %v2201 = vadd.f32 0.0, %v2200
      %v2202 = vpop.f32.mrf.mxu0
      %2203 = vdwg.mxu0
      %v2204 = vadd.f32 %v2054, %v2201
      %v2205 = vmax.f32 %v2204, 0.0
      %v2206 = vmul.f32 %v2205, %v185
      %v2207 = vlaneseq
      %v2208 = vshrl.u32 %v2207, 7
      %v2209 = vsub.s32 0, %v2208
      %v2210 = vrot.slane %v219, %v2209
      %vm2211 = vcmask 326656
      %v2213 = vsel %vm2211, %v2206, 0
      %2215 = vmatprep.subr.mxu0 0.0
      %2216 = vmatpush1.msra.mxu0 0.0
      %2217 = vmatprep.subr.mxu0 0.0
      %2218 = vmatpush1.msra.mxu0 0.0
      %2219 = vmatprep.subr.mxu0 0.0
      %2220 = vmatpush1.msra.mxu0 0.0
      %2221 = vmatprep.subr.mxu0 0.0
      %2222 = vmatpush1.msra.mxu0 0.0
      %2223 = vmatprep.subr.mxu0 0.0
      %2224 = vmatpush1.msra.mxu0 0.0
      %2225 = vmatprep.subr.mxu0 0.0
      %2226 = vmatpush1.msra.mxu0 0.0
      %2227 = vmatprep.subr.mxu0 0.0
      %2228 = vmatpush1.msra.mxu0 0.0
      %2229 = vmatprep.subr.mxu0 0.0
      %2230 = vmatpush1.msra.mxu0 0.0
      %2231 = vmatprep.subr.mxu0 0.0
      %2232 = vmatpush1.msra.mxu0 0.0
      %2233 = vmatprep.subr.mxu0 0.0
      %2234 = vmatpush1.msra.mxu0 0.0
      %2235 = vmatprep.subr.mxu0 0.0
      %2236 = vmatpush1.msra.mxu0 0.0
      %2237 = vmatprep.subr.mxu0 0.0
      %2238 = vmatpush1.msra.mxu0 %v218
      %2239 = vmatprep.subr.mxu0 0.0
      %2240 = vmatpush1.msra.mxu0 %v217
      %2241 = vmatprep.subr.mxu0 0.0
      %2242 = vmatpush1.msra.mxu0 %v216
      %2243 = vmatprep.subr.mxu0 0.0
      %2244 = vmatpush1.msra.mxu0 %v215
      %2245 = vmatprep.subr.mxu0 0.0
      %2246 = vmatpush1.msra.mxu0 %v214
      %2247 = vmatprep.subr.mxu0 0.0
      %2248 = vmatpush2.msra.mxu0 0.0
      %2249 = vmatprep.subr.mxu0 0.0
      %2250 = vmatpush2.msra.mxu0 0.0
      %2251 = vmatprep.subr.mxu0 0.0
      %2252 = vmatpush2.msra.mxu0 0.0
      %2253 = vmatprep.subr.mxu0 0.0
      %2254 = vmatpush2.msra.mxu0 0.0
      %2255 = vmatprep.subr.mxu0 0.0
      %2256 = vmatpush2.msra.mxu0 0.0
      %2257 = vmatprep.subr.mxu0 0.0
      %2258 = vmatpush2.msra.mxu0 0.0
      %2259 = vmatprep.subr.mxu0 0.0
      %2260 = vmatpush2.msra.mxu0 0.0
      %2261 = vmatprep.subr.mxu0 0.0
      %2262 = vmatpush2.msra.mxu0 0.0
      %2263 = vmatprep.subr.mxu0 0.0
      %2264 = vmatpush2.msra.mxu0 0.0
      %2265 = vmatprep.subr.mxu0 0.0
      %2266 = vmatpush2.msra.mxu0 0.0
      %2267 = vmatprep.subr.mxu0 0.0
      %2268 = vmatpush2.msra.mxu0 0.0
      %2269 = vmatprep.subr.mxu0 0.0
      %2270 = vmatpush2.msra.mxu0 0.0
      %2271 = vmatprep.subr.mxu0 0.0
      %2272 = vmatpush2.msra.mxu0 0.0
      %2273 = vmatprep.subr.mxu0 0.0
      %2274 = vmatpush2.msra.mxu0 0.0
      %2275 = vmatprep.subr.mxu0 0.0
      %2276 = vmatpush2.msra.mxu0 0.0
      %2277 = vmatprep.subr.mxu0 0.0
      %2278 = vmatpush2.msra.mxu0 0.0
      %2279 = vmatprep.mubr.f32.mxu0 0.0
      %2280 = vmatmul.mubr.f32.gmra.mxu0 %v2213
      %v2281 = vpop.f32.mrf.mxu0
      %v2282 = vadd.f32 %v2210, %v2281
      %v2283 = vpop.f32.mrf.mxu0
      %2284 = vdwg.mxu0
      %v2285 = vmax.f32 %v2282, 0.0
      %v2286 = vmul.f32 %v2285, %v186
      %v2287 = vlaneseq
      %v2288 = vshrl.u32 %v2287, 7
      %v2289 = vsub.s32 0, %v2288
      %v2290 = vrot.slane %v221, %v2289
      %vm2291 = vcmask 31744
      %v2293 = vsel %vm2291, %v2286, 0
      %v2296 = vsel %vm940, %v220, 0
      %2298 = vmatprep.subr.mxu0 0.0
      %2299 = vmatpush1.msra.mxu0 0.0
      %2300 = vmatprep.subr.mxu0 0.0
      %2301 = vmatpush1.msra.mxu0 0.0
      %2302 = vmatprep.subr.mxu0 0.0
      %2303 = vmatpush1.msra.mxu0 0.0
      %2304 = vmatprep.subr.mxu0 0.0
      %2305 = vmatpush1.msra.mxu0 0.0
      %2306 = vmatprep.subr.mxu0 0.0
      %2307 = vmatpush1.msra.mxu0 0.0
      %2308 = vmatprep.subr.mxu0 0.0
      %2309 = vmatpush1.msra.mxu0 0.0
      %2310 = vmatprep.subr.mxu0 0.0
      %2311 = vmatpush1.msra.mxu0 0.0
      %2312 = vmatprep.subr.mxu0 0.0
      %2313 = vmatpush1.msra.mxu0 0.0
      %2314 = vmatprep.subr.mxu0 0.0
      %2315 = vmatpush1.msra.mxu0 0.0
      %2316 = vmatprep.subr.mxu0 0.0
      %2317 = vmatpush1.msra.mxu0 0.0
      %2318 = vmatprep.subr.mxu0 0.0
      %2319 = vmatpush1.msra.mxu0 0.0
      %2320 = vmatprep.subr.mxu0 0.0
      %2321 = vmatpush1.msra.mxu0 0.0
      %2322 = vmatprep.subr.mxu0 0.0
      %2323 = vmatpush1.msra.mxu0 0.0
      %2324 = vmatprep.subr.mxu0 0.0
      %2325 = vmatpush1.msra.mxu0 0.0
      %2326 = vmatprep.subr.mxu0 0.0
      %2327 = vmatpush1.msra.mxu0 0.0
      %2328 = vmatprep.subr.mxu0 0.0
      %2329 = vmatpush1.msra.mxu0 %v2296
      %2330 = vmatprep.subr.mxu0 0.0
      %2331 = vmatpush2.msra.mxu0 0.0
      %2332 = vmatprep.subr.mxu0 0.0
      %2333 = vmatpush2.msra.mxu0 0.0
      %2334 = vmatprep.subr.mxu0 0.0
      %2335 = vmatpush2.msra.mxu0 0.0
      %2336 = vmatprep.subr.mxu0 0.0
      %2337 = vmatpush2.msra.mxu0 0.0
      %2338 = vmatprep.subr.mxu0 0.0
      %2339 = vmatpush2.msra.mxu0 0.0
      %2340 = vmatprep.subr.mxu0 0.0
      %2341 = vmatpush2.msra.mxu0 0.0
      %2342 = vmatprep.subr.mxu0 0.0
      %2343 = vmatpush2.msra.mxu0 0.0
      %2344 = vmatprep.subr.mxu0 0.0
      %2345 = vmatpush2.msra.mxu0 0.0
      %2346 = vmatprep.subr.mxu0 0.0
      %2347 = vmatpush2.msra.mxu0 0.0
      %2348 = vmatprep.subr.mxu0 0.0
      %2349 = vmatpush2.msra.mxu0 0.0
      %2350 = vmatprep.subr.mxu0 0.0
      %2351 = vmatpush2.msra.mxu0 0.0
      %2352 = vmatprep.subr.mxu0 0.0
      %2353 = vmatpush2.msra.mxu0 0.0
      %2354 = vmatprep.subr.mxu0 0.0
      %2355 = vmatpush2.msra.mxu0 0.0
      %2356 = vmatprep.subr.mxu0 0.0
      %2357 = vmatpush2.msra.mxu0 0.0
      %2358 = vmatprep.subr.mxu0 0.0
      %2359 = vmatpush2.msra.mxu0 0.0
      %2360 = vmatprep.subr.mxu0 0.0
      %2361 = vmatpush2.msra.mxu0 0.0
      %2362 = vmatprep.mubr.f32.mxu0 0.0
      %2363 = vmatmul.mubr.f32.gmra.mxu0 %v2293
      %v2364 = vpop.f32.mrf.mxu0
      %v2365 = vadd.f32 %v2290, %v2364
      %v2366 = vpop.f32.mrf.mxu0
      %2367 = vdwg.mxu0
      %2368 = vst [vmem:[%s168] sm:$0xff] %v2365
      %p2369 = scmp.lt.s32.totalorder %s14, 7
      %s2370 = scalar_select %p2369, %s14, 7
      %s2371 = smul.addr %s2370, 8
      %s2372 = scalar_lea.vmem %s3, %s2371
      // Predicated region
      $region33: #{stochastic_cnn_forward.3} parent=31 // pred_check
        %p2373 = pneg %p100
      $region34: #{stochastic_cnn_forward.3} parent=31 // pred_check_branch
        %2375 = sbr.rel (%p2373) target = $region36
      $region35: #{stochastic_cnn_forward.3} parent=31 // pred_region
        _
      $region36: #{stochastic_cnn_forward.3} parent=31 // pred_fallthru
        _
    $region32: #{stochastic_cnn_forward.3} parent=5 // pred_fallthru
      _
    %p2376 = scmp.le.s32.totalorder 2, %s9
    // Predicated region
    $region37: #{stochastic_cnn_forward.3} parent=5 // pred_check
      %p2377 = pneg %p2376
    $region38: #{stochastic_cnn_forward.3} parent=5 // pred_check_branch
      %2379 = sbr.rel (%p2377) target = $region40
    $region39: #{stochastic_cnn_forward.3} parent=5 // pred_region
      %s2380 = ssub.s32 %s9, 2
      // Predicated region
      $region41: #{stochastic_cnn_forward.3} parent=39 // pred_check
        %p2381 = pneg %p106
      $region42: #{stochastic_cnn_forward.3} parent=39 // pred_check_branch
        %2383 = sbr.rel (%p2381) target = $region44
      $region43: #{stochastic_cnn_forward.3} parent=39 // pred_region
        %p2384 = scmp.lt.s32.totalorder %s15, 7
        %s2385 = scalar_select %p2384, %s15, 7
        %s2386 = smul.addr %s2385, 8
        %s2387 = scalar_lea.vmem %s3, %s2386
      $region44: #{stochastic_cnn_forward.3} parent=39 // pred_fallthru
        _
    $region40: #{stochastic_cnn_forward.3} parent=5 // pred_fallthru
      _
  $region6: #{stochastic_cnn_forward.3} parent=0 // loop_footer
    %s13 = sadd.s32 1, %s9
  $region7: #{stochastic_cnn_forward.3} parent=0 // loop_footer_branch
    %8 = sbr.rel target = $region3
  $region8: #{stochastic_cnn_forward.3} parent=0 // loop_exit
    _

</llo_original>
